<compile_context>
chip_gen: v7x
topology: tpu7x:2x2x1
jax: 0.10.0
libtpu: 0.0.40
codegen_flags: <defaults>
</compile_context>

<pallas_src>
import functools

import jax
import jax.numpy as jnp
from jax.experimental import pallas as pl
from jax.experimental.pallas import tpu as pltpu

LANE = 128   # TPU lane width: hidden/output feature dims padded to this.
SUB = 128    # sub-tile rows for the in-kernel interleave (MXU/VPU overlap).


def _round_up(n, m):
    return (n + m - 1) // m * m


def _pad2(a, rows, cols):
    return jnp.pad(a, ((0, rows - a.shape[0]), (0, cols - a.shape[1])))


def _mlp_kernel(x_ref,
                w1_ref, b1_ref,
                w2_ref, b2_ref,
                w3_ref, b3_ref,
                w4_ref, b4_ref,
                o_ref):
    # Weights (bf16) and biases (f32) are VMEM-resident; load once per step.
    w1 = w1_ref[...]
    w2 = w2_ref[...]
    w3 = w3_ref[...]
    w4 = w4_ref[...]
    b1 = b1_ref[...]
    b2 = b2_ref[...]
    b3 = b3_ref[...]
    b4 = b4_ref[...]

    tb = x_ref.shape[0]
    sub = SUB if (tb > SUB and tb % SUB == 0) else tb

    # Independent per-sub-tile chains: no data deps between chains, so the
    # scheduler can keep the MXU fed while another chain runs its ReLU/cast
    # epilogue on the VPU.
    for s in range(tb // sub):
        lo = s * sub
        # Fused f32 -> bf16 cast of the input tile (saves an XLA convert pass).
        x = x_ref[lo:lo + sub, :].astype(jnp.bfloat16)

        h = jnp.dot(x, w1, preferred_element_type=jnp.float32) + b1
        h = jnp.maximum(h, 0.0).astype(jnp.bfloat16)     # ReLU in f32, bf16 for MXU

        h = jnp.dot(h, w2, preferred_element_type=jnp.float32) + b2
        h = jnp.maximum(h, 0.0).astype(jnp.bfloat16)

        h = jnp.dot(h, w3, preferred_element_type=jnp.float32) + b3
        h = jnp.maximum(h, 0.0).astype(jnp.bfloat16)

        # Lane-dense (sub, dp_out) output slab -> unmasked stores.
        out = jnp.dot(h, w4, preferred_element_type=jnp.float32) + b4
        o_ref[lo:lo + sub, :] = out.astype(o_ref.dtype)


def prepare_params(params):
    """One-time parameter preparation (hoisted out of the forward hot path).

    Pads hidden/output feature dims to multiples of 128 lanes and casts
    weights to bf16 (MXU operand dtype), biases to f32.  The input feature
    dim (w1 rows) is NOT padded.  Zero padding is mathematically inert.
    """
    d_in = params["w1"].shape[0]
    d1 = params["w1"].shape[1]
    d2 = params["w2"].shape[1]
    d3 = params["w3"].shape[1]
    d_out = params["w4"].shape[1]
    dp1, dp2, dp3, dp_out = (_round_up(d, LANE) for d in (d1, d2, d3, d_out))

    return {
        "w1": _pad2(params["w1"], d_in, dp1).astype(jnp.bfloat16),
        "b1": _pad2(params["b1"], 1, dp1).astype(jnp.float32),
        "w2": _pad2(params["w2"], dp1, dp2).astype(jnp.bfloat16),
        "b2": _pad2(params["b2"], 1, dp2).astype(jnp.float32),
        "w3": _pad2(params["w3"], dp2, dp3).astype(jnp.bfloat16),
        "b3": _pad2(params["b3"], 1, dp3).astype(jnp.float32),
        "w4": _pad2(params["w4"], dp3, dp_out).astype(jnp.bfloat16),
        "b4": _pad2(params["b4"], 1, dp_out).astype(jnp.float32),
    }


@functools.partial(jax.jit, static_argnames=("tb", "out_dtype"))
def output_net_forward(x, prep, *, tb=None, out_dtype=jnp.float32):
    """x: (B, LSTM_dim) f32.  prep: output of prepare_params().

    Returns the padded (bp, dp_out) slab (out_dtype); the consumer slices
    [:B, :d_out].  Padded rows/columns are exactly zero.
    (out_dtype=jnp.bfloat16 halves output writeback on v5e if tolerated.)
    """
    B, d_in = x.shape
    dp1 = prep["w1"].shape[1]
    dp2 = prep["w2"].shape[1]
    dp3 = prep["w3"].shape[1]
    dp_out = prep["w4"].shape[1]

    if tb is None:
        # One tile for small batches (grid=(1,)), else 256-row tiles.
        # On v7x pick tb explicitly so bp//tb is even and >= 2 (2 TensorCores).
        tb = _round_up(B, 8) if B <= 512 else 256
    bp = _round_up(B, tb)

    # Only per-call data prep: pad batch rows if needed (no-op when B % tb == 0),
    # no feature-dim padding, no host-side dtype convert (cast fused in kernel).
    xp = x if bp == B else jnp.pad(x, ((0, bp - B), (0, 0)))

    grid = (bp // tb,)

    # x/out tiles stream over the batch axis; weights & biases are resident
    # (constant index_map -> loaded once, reused every grid step).
    # If hidden dims are ever scaled up (v7x has only 64 MiB VMEM), mark the
    # weight specs pipeline_mode=pl.Buffered(1) and set vmem_limit_bytes.
    in_specs = [
        pl.BlockSpec((tb, d_in), lambda i: (i, 0)),       # x tile (K not padded)
        pl.BlockSpec((d_in, dp1), lambda i: (0, 0)),      # w1
        pl.BlockSpec((1, dp1), lambda i: (0, 0)),         # b1
        pl.BlockSpec((dp1, dp2), lambda i: (0, 0)),       # w2
        pl.BlockSpec((1, dp2), lambda i: (0, 0)),         # b2
        pl.BlockSpec((dp2, dp3), lambda i: (0, 0)),       # w3
        pl.BlockSpec((1, dp3), lambda i: (0, 0)),         # b3
        pl.BlockSpec((dp3, dp_out), lambda i: (0, 0)),    # w4
        pl.BlockSpec((1, dp_out), lambda i: (0, 0)),      # b4
    ]
    out_specs = pl.BlockSpec((tb, dp_out), lambda i: (i, 0))

    return pl.pallas_call(
        _mlp_kernel,
        out_shape=jax.ShapeDtypeStruct((bp, dp_out), out_dtype),
        grid=grid,
        in_specs=in_specs,
        out_specs=out_specs,
        compiler_params=pltpu.CompilerParams(
            dimension_semantics=("parallel",),            # megacore batch sharding
        ),
    )(xp, prep["w1"], prep["b1"], prep["w2"], prep["b2"],
      prep["w3"], prep["b3"], prep["w4"], prep["b4"])


def init_params(key, LSTM_dim, hidden_dim1, hidden_dim2, data_dim):
    """Deterministic synthetic init (uniform, roughly PyTorch Linear scale)."""
    dims = [(LSTM_dim, hidden_dim1),
            (hidden_dim1, hidden_dim2),
            (hidden_dim2, hidden_dim2),
            (hidden_dim2, data_dim)]
    params = {}
    for i, (fan_in, fan_out) in enumerate(dims, start=1):
        key, kw, kb = jax.random.split(key, 3)
        bound = 1.0 / (fan_in ** 0.5)
        params[f"w{i}"] = jax.random.uniform(
            kw, (fan_in, fan_out), jnp.float32, -bound, bound)
        # biases kept 2D (1, out) for clean TPU lane layout / broadcasting
        params[f"b{i}"] = jax.random.uniform(
            kb, (1, fan_out), jnp.float32, -bound, bound)
    return params


def reference_forward_bf16(x, params):
    """Pure-JAX reference with the same bf16-operand / f32-accumulate recipe."""
    def lin(h, w, b):
        return jnp.dot(h.astype(jnp.bfloat16), w.astype(jnp.bfloat16),
                       preferred_element_type=jnp.float32) + b
    h = jnp.maximum(lin(x, params["w1"], params["b1"]), 0.0)
    h = jnp.maximum(lin(h, params["w2"], params["b2"]), 0.0)
    h = jnp.maximum(lin(h, params["w3"], params["b3"]), 0.0)
    return lin(h, params["w4"], params["b4"])


def reference_forward_f32(x, params):
    h = jnp.maximum(x @ params["w1"] + params["b1"], 0.0)
    h = jnp.maximum(h @ params["w2"] + params["b2"], 0.0)
    h = jnp.maximum(h @ params["w3"] + params["b3"], 0.0)
    return h @ params["w4"] + params["b4"]


if __name__ == "__main__":
    # Module-implied shapes: x is (batch, LSTM_dim).
    B, LSTM_dim, hidden_dim1, hidden_dim2, data_dim = 256, 32, 64, 64, 16

    key = jax.random.PRNGKey(0)
    key, kx = jax.random.split(key)
    x = jax.random.normal(kx, (B, LSTM_dim), jnp.float32)
    params = init_params(key, LSTM_dim, hidden_dim1, hidden_dim2, data_dim)

    # One-time parameter preparation (off the per-call hot path).
    prep = jax.block_until_ready(prepare_params(params))

    # Forward: returns padded (bp, dp_out) slab; grid=(1,) for B=256.
    out_padded = output_net_forward(x, prep)
    out_padded = jax.block_until_ready(out_padded)

    # Consumer-side slice (kept out of the jitted hot path per review).
    out = out_padded[:B, :data_dim]
    assert out.shape == (B, data_dim)

    # Padded columns / rows are exactly zero (zero-padded weights & biases).
    assert jnp.all(out_padded[:, data_dim:] == 0.0)

    # Exact recipe match (bf16 operands, f32 accumulation).
    ref_bf16 = reference_forward_bf16(x, params)
    assert jnp.allclose(out, ref_bf16, atol=1e-2, rtol=1e-2), (
        float(jnp.max(jnp.abs(out - ref_bf16))))

    # Sanity vs full-f32 math (bf16 quantization error only).
    ref_f32 = reference_forward_f32(x, params)
    assert jnp.max(jnp.abs(out - ref_f32)) < 5e-2

    print("KERNEL_OK")
</pallas_src>

<mosaic_0001>
module attributes {stable_mosaic.version = 11 : i64} {
  func.func @_mlp_kernel(%arg0: i32, %arg1: memref<256x32xf32, #tpu.memory_space<vmem>>, %arg2: memref<32x128xbf16, #tpu.memory_space<vmem>>, %arg3: memref<1x128xf32, #tpu.memory_space<vmem>>, %arg4: memref<128x128xbf16, #tpu.memory_space<vmem>>, %arg5: memref<1x128xf32, #tpu.memory_space<vmem>>, %arg6: memref<128x128xbf16, #tpu.memory_space<vmem>>, %arg7: memref<1x128xf32, #tpu.memory_space<vmem>>, %arg8: memref<128x128xbf16, #tpu.memory_space<vmem>>, %arg9: memref<1x128xf32, #tpu.memory_space<vmem>>, %arg10: memref<256x128xf32, #tpu.memory_space<vmem>>) attributes {dimension_semantics = [#tpu.dimension_semantics<parallel>], iteration_bounds = array<i64: 1>, scalar_prefetch = 0 : i64, scratch_operands = 0 : i64, tpu.core_type = #tpu.core_type<tc>, window_params = [{transform_indices = @transform_0, window_bounds = array<i64: 256, 32>}, {pipeline_mode = #tpu.pipeline_mode<synchronous>, transform_indices = @transform_1, window_bounds = array<i64: 32, 128>}, {pipeline_mode = #tpu.pipeline_mode<synchronous>, transform_indices = @transform_2, window_bounds = array<i64: 1, 128>}, {pipeline_mode = #tpu.pipeline_mode<synchronous>, transform_indices = @transform_3, window_bounds = array<i64: 128, 128>}, {pipeline_mode = #tpu.pipeline_mode<synchronous>, transform_indices = @transform_4, window_bounds = array<i64: 1, 128>}, {pipeline_mode = #tpu.pipeline_mode<synchronous>, transform_indices = @transform_5, window_bounds = array<i64: 128, 128>}, {pipeline_mode = #tpu.pipeline_mode<synchronous>, transform_indices = @transform_6, window_bounds = array<i64: 1, 128>}, {pipeline_mode = #tpu.pipeline_mode<synchronous>, transform_indices = @transform_7, window_bounds = array<i64: 128, 128>}, {pipeline_mode = #tpu.pipeline_mode<synchronous>, transform_indices = @transform_8, window_bounds = array<i64: 1, 128>}, {transform_indices = @transform_9, window_bounds = array<i64: 256, 128>}]} {
    %c0 = arith.constant 0 : index
    %c0_0 = arith.constant 0 : index
    %0 = vector.load %arg2[%c0, %c0_0] : memref<32x128xbf16, #tpu.memory_space<vmem>>, vector<32x128xbf16>
    %c0_1 = arith.constant 0 : index
    %c0_2 = arith.constant 0 : index
    %1 = vector.load %arg4[%c0_1, %c0_2] : memref<128x128xbf16, #tpu.memory_space<vmem>>, vector<128x128xbf16>
    %c0_3 = arith.constant 0 : index
    %c0_4 = arith.constant 0 : index
    %2 = vector.load %arg6[%c0_3, %c0_4] : memref<128x128xbf16, #tpu.memory_space<vmem>>, vector<128x128xbf16>
    %c0_5 = arith.constant 0 : index
    %c0_6 = arith.constant 0 : index
    %3 = vector.load %arg8[%c0_5, %c0_6] : memref<128x128xbf16, #tpu.memory_space<vmem>>, vector<128x128xbf16>
    %c0_7 = arith.constant 0 : index
    %c0_8 = arith.constant 0 : index
    %4 = vector.load %arg3[%c0_7, %c0_8] : memref<1x128xf32, #tpu.memory_space<vmem>>, vector<1x128xf32>
    %c0_9 = arith.constant 0 : index
    %c0_10 = arith.constant 0 : index
    %5 = vector.load %arg5[%c0_9, %c0_10] : memref<1x128xf32, #tpu.memory_space<vmem>>, vector<1x128xf32>
    %c0_11 = arith.constant 0 : index
    %c0_12 = arith.constant 0 : index
    %6 = vector.load %arg7[%c0_11, %c0_12] : memref<1x128xf32, #tpu.memory_space<vmem>>, vector<1x128xf32>
    %c0_13 = arith.constant 0 : index
    %c0_14 = arith.constant 0 : index
    %7 = vector.load %arg9[%c0_13, %c0_14] : memref<1x128xf32, #tpu.memory_space<vmem>>, vector<1x128xf32>
    %c0_15 = arith.constant 0 : index
    %c0_16 = arith.constant 0 : index
    %8 = vector.load %arg1[%c0_15, %c0_16] : memref<256x32xf32, #tpu.memory_space<vmem>>, vector<128x32xf32>
    %9 = arith.truncf %8 : vector<128x32xf32> to vector<128x32xbf16>
    %cst = arith.constant dense<0.000000e+00> : vector<128x128xf32>
    %10 = tpu.matmul %9, %0, %cst {dimension_numbers = #tpu.dot_dimension_numbers<[1], [0], [0], [1], [0, 0, 1, 1], [], []>} : vector<128x32xbf16>, vector<32x128xbf16>, vector<128x128xf32> -> vector<128x128xf32>
    %11 = vector.broadcast %4 : vector<1x128xf32> to vector<128x128xf32>
    %12 = arith.addf %10, %11 : vector<128x128xf32>
    %cst_17 = arith.constant 0.000000e+00 : f32
    %13 = vector.broadcast %cst_17 : f32 to vector<128x128xf32>
    %14 = arith.maximumf %12, %13 : vector<128x128xf32>
    %15 = arith.truncf %14 : vector<128x128xf32> to vector<128x128xbf16>
    %cst_18 = arith.constant dense<0.000000e+00> : vector<128x128xf32>
    %16 = tpu.matmul %15, %1, %cst_18 {dimension_numbers = #tpu.dot_dimension_numbers<[1], [0], [0], [1], [0, 0, 1, 1], [], []>} : vector<128x128xbf16>, vector<128x128xbf16>, vector<128x128xf32> -> vector<128x128xf32>
    %17 = vector.broadcast %5 : vector<1x128xf32> to vector<128x128xf32>
    %18 = arith.addf %16, %17 : vector<128x128xf32>
    %cst_19 = arith.constant 0.000000e+00 : f32
    %19 = vector.broadcast %cst_19 : f32 to vector<128x128xf32>
    %20 = arith.maximumf %18, %19 : vector<128x128xf32>
    %21 = arith.truncf %20 : vector<128x128xf32> to vector<128x128xbf16>
    %cst_20 = arith.constant dense<0.000000e+00> : vector<128x128xf32>
    %22 = tpu.matmul %21, %2, %cst_20 {dimension_numbers = #tpu.dot_dimension_numbers<[1], [0], [0], [1], [0, 0, 1, 1], [], []>} : vector<128x128xbf16>, vector<128x128xbf16>, vector<128x128xf32> -> vector<128x128xf32>
    %23 = vector.broadcast %6 : vector<1x128xf32> to vector<128x128xf32>
    %24 = arith.addf %22, %23 : vector<128x128xf32>
    %cst_21 = arith.constant 0.000000e+00 : f32
    %25 = vector.broadcast %cst_21 : f32 to vector<128x128xf32>
    %26 = arith.maximumf %24, %25 : vector<128x128xf32>
    %27 = arith.truncf %26 : vector<128x128xf32> to vector<128x128xbf16>
    %cst_22 = arith.constant dense<0.000000e+00> : vector<128x128xf32>
    %28 = tpu.matmul %27, %3, %cst_22 {dimension_numbers = #tpu.dot_dimension_numbers<[1], [0], [0], [1], [0, 0, 1, 1], [], []>} : vector<128x128xbf16>, vector<128x128xbf16>, vector<128x128xf32> -> vector<128x128xf32>
    %29 = vector.broadcast %7 : vector<1x128xf32> to vector<128x128xf32>
    %30 = arith.addf %28, %29 : vector<128x128xf32>
    %c0_23 = arith.constant 0 : index
    %c0_24 = arith.constant 0 : index
    %31 = vector.load %arg10[%c0_23, %c0_24] : memref<256x128xf32, #tpu.memory_space<vmem>>, vector<128x128xf32>
    tpu.vector_store %arg10[%c0_23, %c0_24], %30 {strides = array<i32>} : memref<256x128xf32, #tpu.memory_space<vmem>>, vector<128x128xf32>,
    %c128 = arith.constant 128 : index
    %c0_25 = arith.constant 0 : index
    %32 = vector.load %arg1[%c128, %c0_25] : memref<256x32xf32, #tpu.memory_space<vmem>>, vector<128x32xf32>
    %33 = arith.truncf %32 : vector<128x32xf32> to vector<128x32xbf16>
    %cst_26 = arith.constant dense<0.000000e+00> : vector<128x128xf32>
    %34 = tpu.matmul %33, %0, %cst_26 {dimension_numbers = #tpu.dot_dimension_numbers<[1], [0], [0], [1], [0, 0, 1, 1], [], []>} : vector<128x32xbf16>, vector<32x128xbf16>, vector<128x128xf32> -> vector<128x128xf32>
    %35 = vector.broadcast %4 : vector<1x128xf32> to vector<128x128xf32>
    %36 = arith.addf %34, %35 : vector<128x128xf32>
    %cst_27 = arith.constant 0.000000e+00 : f32
    %37 = vector.broadcast %cst_27 : f32 to vector<128x128xf32>
    %38 = arith.maximumf %36, %37 : vector<128x128xf32>
    %39 = arith.truncf %38 : vector<128x128xf32> to vector<128x128xbf16>
    %cst_28 = arith.constant dense<0.000000e+00> : vector<128x128xf32>
    %40 = tpu.matmul %39, %1, %cst_28 {dimension_numbers = #tpu.dot_dimension_numbers<[1], [0], [0], [1], [0, 0, 1, 1], [], []>} : vector<128x128xbf16>, vector<128x128xbf16>, vector<128x128xf32> -> vector<128x128xf32>
    %41 = vector.broadcast %5 : vector<1x128xf32> to vector<128x128xf32>
    %42 = arith.addf %40, %41 : vector<128x128xf32>
    %cst_29 = arith.constant 0.000000e+00 : f32
    %43 = vector.broadcast %cst_29 : f32 to vector<128x128xf32>
    %44 = arith.maximumf %42, %43 : vector<128x128xf32>
    %45 = arith.truncf %44 : vector<128x128xf32> to vector<128x128xbf16>
    %cst_30 = arith.constant dense<0.000000e+00> : vector<128x128xf32>
    %46 = tpu.matmul %45, %2, %cst_30 {dimension_numbers = #tpu.dot_dimension_numbers<[1], [0], [0], [1], [0, 0, 1, 1], [], []>} : vector<128x128xbf16>, vector<128x128xbf16>, vector<128x128xf32> -> vector<128x128xf32>
    %47 = vector.broadcast %6 : vector<1x128xf32> to vector<128x128xf32>
    %48 = arith.addf %46, %47 : vector<128x128xf32>
    %cst_31 = arith.constant 0.000000e+00 : f32
    %49 = vector.broadcast %cst_31 : f32 to vector<128x128xf32>
    %50 = arith.maximumf %48, %49 : vector<128x128xf32>
    %51 = arith.truncf %50 : vector<128x128xf32> to vector<128x128xbf16>
    %cst_32 = arith.constant dense<0.000000e+00> : vector<128x128xf32>
    %52 = tpu.matmul %51, %3, %cst_32 {dimension_numbers = #tpu.dot_dimension_numbers<[1], [0], [0], [1], [0, 0, 1, 1], [], []>} : vector<128x128xbf16>, vector<128x128xbf16>, vector<128x128xf32> -> vector<128x128xf32>
    %53 = vector.broadcast %7 : vector<1x128xf32> to vector<128x128xf32>
    %54 = arith.addf %52, %53 : vector<128x128xf32>
    %c128_33 = arith.constant 128 : index
    %c0_34 = arith.constant 0 : index
    %55 = vector.load %arg10[%c128_33, %c0_34] : memref<256x128xf32, #tpu.memory_space<vmem>>, vector<128x128xf32>
    tpu.vector_store %arg10[%c128_33, %c0_34], %54 {strides = array<i32>} : memref<256x128xf32, #tpu.memory_space<vmem>>, vector<128x128xf32>,
    return
  }
  func.func @transform_0(%arg0: i32) -> (i32, i32) {
    %c0_i32 = arith.constant 0 : i32
    %c0_i32_0 = arith.constant 0 : i32
    return %arg0, %c0_i32 : i32, i32
  }
  func.func @transform_1(%arg0: i32) -> (i32, i32) {
    %c0_i32 = arith.constant 0 : i32
    %c0_i32_0 = arith.constant 0 : i32
    %c0_i32_1 = arith.constant 0 : i32
    return %c0_i32, %c0_i32_0 : i32, i32
  }
  func.func @transform_2(%arg0: i32) -> (i32, i32) {
    %c0_i32 = arith.constant 0 : i32
    %c0_i32_0 = arith.constant 0 : i32
    %c0_i32_1 = arith.constant 0 : i32
    return %c0_i32, %c0_i32_0 : i32, i32
  }
  func.func @transform_3(%arg0: i32) -> (i32, i32) {
    %c0_i32 = arith.constant 0 : i32
    %c0_i32_0 = arith.constant 0 : i32
    %c0_i32_1 = arith.constant 0 : i32
    return %c0_i32, %c0_i32_0 : i32, i32
  }
  func.func @transform_4(%arg0: i32) -> (i32, i32) {
    %c0_i32 = arith.constant 0 : i32
    %c0_i32_0 = arith.constant 0 : i32
    %c0_i32_1 = arith.constant 0 : i32
    return %c0_i32, %c0_i32_0 : i32, i32
  }
  func.func @transform_5(%arg0: i32) -> (i32, i32) {
    %c0_i32 = arith.constant 0 : i32
    %c0_i32_0 = arith.constant 0 : i32
    %c0_i32_1 = arith.constant 0 : i32
    return %c0_i32, %c0_i32_0 : i32, i32
  }
  func.func @transform_6(%arg0: i32) -> (i32, i32) {
    %c0_i32 = arith.constant 0 : i32
    %c0_i32_0 = arith.constant 0 : i32
    %c0_i32_1 = arith.constant 0 : i32
    return %c0_i32, %c0_i32_0 : i32, i32
  }
  func.func @transform_7(%arg0: i32) -> (i32, i32) {
    %c0_i32 = arith.constant 0 : i32
    %c0_i32_0 = arith.constant 0 : i32
    %c0_i32_1 = arith.constant 0 : i32
    return %c0_i32, %c0_i32_0 : i32, i32
  }
  func.func @transform_8(%arg0: i32) -> (i32, i32) {
    %c0_i32 = arith.constant 0 : i32
    %c0_i32_0 = arith.constant 0 : i32
    %c0_i32_1 = arith.constant 0 : i32
    return %c0_i32, %c0_i32_0 : i32, i32
  }
  func.func @transform_9(%arg0: i32) -> (i32, i32) {
    %c0_i32 = arith.constant 0 : i32
    %c0_i32_0 = arith.constant 0 : i32
    return %arg0, %c0_i32 : i32, i32
  }
}

</mosaic_0001>

<llo_original>
// kernel: output_net_forward.1
$region0: #{output_net_forward.1}
  #allocation0 [shape = 'u32[]', space=smem, size = 0x4, offset = 0x4, fixed_abs, tag = 'smem constant byte address 0x4 - core index']
  #allocation1 [shape = 'u32[144,128]{1,0:T(1,128)}', space=vmem, size = 0x12000, scoped, tag = 'internal scratch']
  %s0 = inlined_call_operand.vmem [shape: f32[256,32], index: 0, kind: input, shape index: {}]
  %s1 = inlined_call_operand.vmem [shape: bf16[32,128], index: 1, kind: input, shape index: {}]
  %s2 = inlined_call_operand.vmem [shape: f32[1,128], index: 2, kind: input, shape index: {}]
  %s3 = inlined_call_operand.vmem [shape: bf16[128,128], index: 3, kind: input, shape index: {}]
  %s4 = inlined_call_operand.vmem [shape: f32[1,128], index: 4, kind: input, shape index: {}]
  %s5 = inlined_call_operand.vmem [shape: bf16[128,128], index: 5, kind: input, shape index: {}]
  %s6 = inlined_call_operand.vmem [shape: f32[1,128], index: 6, kind: input, shape index: {}]
  %s7 = inlined_call_operand.vmem [shape: bf16[128,128], index: 7, kind: input, shape index: {}]
  %s8 = inlined_call_operand.vmem [shape: f32[1,128], index: 8, kind: input, shape index: {}]
  %s9 = inlined_call_operand.hbm [shape: f32[256,128], index: 9, kind: output, shape index: {}]
  %s10 = sld [smem:[#allocation0]]
  $region46: #{output_net_forward.1} parent=0
    _
  %s12 = ssub.s32 1, %s10
  %s13 = scalar_select 0, %s12, %s10
  $region1: #{output_net_forward.1} parent=0
    #allocation2 [shape = 'u8[131072]{0}', space=vmem, size = 0x20000, scoped, tag = 'output window, operand 0, single buffered']
    #allocation3 [shape = 's32[1]{0}', space=sflag, size = 0x4, scoped, tag = 'scoped memory for output_net_forward.1']
    %14 = vsyncpa [#allocation3], 0
    // Predicated region
    $region2: #{output_net_forward.1} parent=1 // pred_check
      _
    $region3: #{output_net_forward.1} parent=1 // pred_check_branch
      %16 = sbr.rel (0) target = $region5
    $region4: #{output_net_forward.1} parent=1 // pred_region
      _
    $region5: #{output_net_forward.1} parent=1 // pred_fallthru
      _
    // Predicated region
    $region6: #{output_net_forward.1} parent=1 // pred_check
      _
    $region7: #{output_net_forward.1} parent=1 // pred_check_branch
      %18 = sbr.rel (0) target = $region9
    $region8: #{output_net_forward.1} parent=1 // pred_region
      _
    $region9: #{output_net_forward.1} parent=1 // pred_fallthru
      _
    // Predicated region
    $region10: #{output_net_forward.1} parent=1 // pred_check
      _
    $region11: #{output_net_forward.1} parent=1 // pred_check_branch
      %20 = sbr.rel (0) target = $region13
    $region12: #{output_net_forward.1} parent=1 // pred_region
      _
    $region13: #{output_net_forward.1} parent=1 // pred_fallthru
      _
    // Predicated region
    $region14: #{output_net_forward.1} parent=1 // pred_check
      _
    $region15: #{output_net_forward.1} parent=1 // pred_check_branch
      %22 = sbr.rel (0) target = $region17
    $region16: #{output_net_forward.1} parent=1 // pred_region
      _
    $region17: #{output_net_forward.1} parent=1 // pred_fallthru
      _
    // Predicated region
    $region18: #{output_net_forward.1} parent=1 // pred_check
      _
    $region19: #{output_net_forward.1} parent=1 // pred_check_branch
      %24 = sbr.rel (0) target = $region21
    $region20: #{output_net_forward.1} parent=1 // pred_region
      _
    $region21: #{output_net_forward.1} parent=1 // pred_fallthru
      _
    // Predicated region
    $region22: #{output_net_forward.1} parent=1 // pred_check
      _
    $region23: #{output_net_forward.1} parent=1 // pred_check_branch
      %26 = sbr.rel (0) target = $region25
    $region24: #{output_net_forward.1} parent=1 // pred_region
      _
    $region25: #{output_net_forward.1} parent=1 // pred_fallthru
      _
    // Predicated region
    $region26: #{output_net_forward.1} parent=1 // pred_check
      _
    $region27: #{output_net_forward.1} parent=1 // pred_check_branch
      %28 = sbr.rel (0) target = $region29
    $region28: #{output_net_forward.1} parent=1 // pred_region
      _
    $region29: #{output_net_forward.1} parent=1 // pred_fallthru
      _
    // Predicated region
    $region30: #{output_net_forward.1} parent=1 // pred_check
      _
    $region31: #{output_net_forward.1} parent=1 // pred_check_branch
      %30 = sbr.rel (0) target = $region33
    $region32: #{output_net_forward.1} parent=1 // pred_region
      _
    $region33: #{output_net_forward.1} parent=1 // pred_fallthru
      _
    // Predicated region
    $region34: #{output_net_forward.1} parent=1 // pred_check
      _
    $region35: #{output_net_forward.1} parent=1 // pred_check_branch
      %32 = sbr.rel (0) target = $region37
    $region36: #{output_net_forward.1} parent=1 // pred_region
      _
    $region37: #{output_net_forward.1} parent=1 // pred_fallthru
      _
    %v34 = vld [vmem:[%s1] sm:$0xf]
    %v35 = vld [vmem:[%s1 + $0x4] sm:$0xf]
    %v36 = vld [vmem:[%s1 + $0x8] sm:$0xf]
    %v37 = vld [vmem:[%s1 + $0xc] sm:$0xf]
    %v38 = vld [vmem:[%s3] sm:$0xf]
    %v39 = vld [vmem:[%s3 + $0x4] sm:$0xf]
    %v40 = vld [vmem:[%s3 + $0x8] sm:$0xf]
    %v41 = vld [vmem:[%s3 + $0xc] sm:$0xf]
    %v42 = vld [vmem:[%s3 + $0x10] sm:$0xf]
    %v43 = vld [vmem:[%s3 + $0x14] sm:$0xf]
    %v44 = vld [vmem:[%s3 + $0x18] sm:$0xf]
    %v45 = vld [vmem:[%s3 + $0x1c] sm:$0xf]
    %v46 = vld [vmem:[%s3 + $0x20] sm:$0xf]
    %v47 = vld [vmem:[%s3 + $0x24] sm:$0xf]
    %v48 = vld [vmem:[%s3 + $0x28] sm:$0xf]
    %v49 = vld [vmem:[%s3 + $0x2c] sm:$0xf]
    %v50 = vld [vmem:[%s3 + $0x30] sm:$0xf]
    %v51 = vld [vmem:[%s3 + $0x34] sm:$0xf]
    %v52 = vld [vmem:[%s3 + $0x38] sm:$0xf]
    %v53 = vld [vmem:[%s3 + $0x3c] sm:$0xf]
    %v54 = vld [vmem:[%s5] sm:$0xf]
    %v55 = vld [vmem:[%s5 + $0x4] sm:$0xf]
    %v56 = vld [vmem:[%s5 + $0x8] sm:$0xf]
    %v57 = vld [vmem:[%s5 + $0xc] sm:$0xf]
    %v58 = vld [vmem:[%s5 + $0x10] sm:$0xf]
    %v59 = vld [vmem:[%s5 + $0x14] sm:$0xf]
    %v60 = vld [vmem:[%s5 + $0x18] sm:$0xf]
    %v61 = vld [vmem:[%s5 + $0x1c] sm:$0xf]
    %v62 = vld [vmem:[%s5 + $0x20] sm:$0xf]
    %v63 = vld [vmem:[%s5 + $0x24] sm:$0xf]
    %v64 = vld [vmem:[%s5 + $0x28] sm:$0xf]
    %v65 = vld [vmem:[%s5 + $0x2c] sm:$0xf]
    %v66 = vld [vmem:[%s5 + $0x30] sm:$0xf]
    %v67 = vld [vmem:[%s5 + $0x34] sm:$0xf]
    %v68 = vld [vmem:[%s5 + $0x38] sm:$0xf]
    %v69 = vld [vmem:[%s5 + $0x3c] sm:$0xf]
    %v70 = vld [vmem:[%s7] sm:$0xf]
    %v71 = vld [vmem:[%s7 + $0x4] sm:$0xf]
    %v72 = vld [vmem:[%s7 + $0x8] sm:$0xf]
    %v73 = vld [vmem:[%s7 + $0xc] sm:$0xf]
    %v74 = vld [vmem:[%s7 + $0x10] sm:$0xf]
    %v75 = vld [vmem:[%s7 + $0x14] sm:$0xf]
    %v76 = vld [vmem:[%s7 + $0x18] sm:$0xf]
    %v77 = vld [vmem:[%s7 + $0x1c] sm:$0xf]
    %v78 = vld [vmem:[%s7 + $0x20] sm:$0xf]
    %v79 = vld [vmem:[%s7 + $0x24] sm:$0xf]
    %v80 = vld [vmem:[%s7 + $0x28] sm:$0xf]
    %v81 = vld [vmem:[%s7 + $0x2c] sm:$0xf]
    %v82 = vld [vmem:[%s7 + $0x30] sm:$0xf]
    %v83 = vld [vmem:[%s7 + $0x34] sm:$0xf]
    %v84 = vld [vmem:[%s7 + $0x38] sm:$0xf]
    %v85 = vld [vmem:[%s7 + $0x3c] sm:$0xf]
    %v86 = vld [vmem:[%s2] sm:$0x1]
    %v87 = vld [vmem:[%s4] sm:$0x1]
    %v88 = vld [vmem:[%s6] sm:$0x1]
    %v89 = vld [vmem:[%s8] sm:$0x1]
    %v90 = vld [vmem:[%s0] sm:$0xff]
    %v91 = vld [vmem:[%s0 + $0x8] sm:$0xff]
    %v92 = vld [vmem:[%s0 + $0x10] sm:$0xff]
    %v93 = vld [vmem:[%s0 + $0x18] sm:$0xff]
    %v94 = vld [vmem:[%s0 + $0x20] sm:$0xff]
    %v95 = vld [vmem:[%s0 + $0x28] sm:$0xff]
    %v96 = vld [vmem:[%s0 + $0x30] sm:$0xff]
    %v97 = vld [vmem:[%s0 + $0x38] sm:$0xff]
    %v98 = vld [vmem:[%s0 + $0x40] sm:$0xff]
    %v99 = vld [vmem:[%s0 + $0x48] sm:$0xff]
    %v100 = vld [vmem:[%s0 + $0x50] sm:$0xff]
    %v101 = vld [vmem:[%s0 + $0x58] sm:$0xff]
    %v102 = vld [vmem:[%s0 + $0x60] sm:$0xff]
    %v103 = vld [vmem:[%s0 + $0x68] sm:$0xff]
    %v104 = vld [vmem:[%s0 + $0x70] sm:$0xff]
    %v105 = vld [vmem:[%s0 + $0x78] sm:$0xff]
    %v106 = vpack.c.bf16 %v91, %v90
    %v107 = vpack.c.bf16 %v93, %v92
    %v108 = vpack.c.bf16 %v95, %v94
    %v109 = vpack.c.bf16 %v97, %v96
    %v110 = vpack.c.bf16 %v99, %v98
    %v111 = vpack.c.bf16 %v101, %v100
    %v112 = vpack.c.bf16 %v103, %v102
    %v113 = vpack.c.bf16 %v105, %v104
    %v115 = vlaneseq
    %v116 = vshrl.u32 %v115, 7
    %v117 = vsub.s32 0, %v116
    %v118 = vrot.slane %v86, %v117
    %v124 = vunpack.c.l.b16 %v34
    %v125 = vunpack.c.l.b16 %v35
    %v126 = vunpack.c.l.b16 %v36
    %v127 = vunpack.c.l.b16 %v37
    %v128 = vpack.c.b16 %v125, %v124
    %v129 = vpack.c.b16 %v127, %v126
    %vm132 = vcmask 261120
    %v134 = vsel %vm132, %v106, 0
    %v137 = vsel %vm132, %v107, 0
    %v140 = vsel %vm132, %v108, 0
    %v143 = vsel %vm132, %v109, 0
    %v146 = vsel %vm132, %v110, 0
    %v149 = vsel %vm132, %v111, 0
    %v152 = vsel %vm132, %v112, 0
    %v155 = vsel %vm132, %v113, 0
    %157 = vmatprep.subr.bf16.mxu0 0
    %158 = vmatpush1.bf16.msra.mxu0 %v128
    %159 = vmatprep.subr.bf16.mxu0 0
    %160 = vmatpush1.bf16.msra.mxu0 %v129
    %161 = vmatprep.subr.bf16.mxu0 0
    %162 = vmatpush1.bf16.msra.mxu0 0
    %163 = vmatprep.subr.bf16.mxu0 0
    %164 = vmatpush1.bf16.msra.mxu0 0
    %165 = vmatprep.subr.bf16.mxu0 0
    %166 = vmatpush1.bf16.msra.mxu0 0
    %167 = vmatprep.subr.bf16.mxu0 0
    %168 = vmatpush1.bf16.msra.mxu0 0
    %169 = vmatprep.subr.bf16.mxu0 0
    %170 = vmatpush1.bf16.msra.mxu0 0
    %171 = vmatprep.subr.bf16.mxu0 0
    %172 = vmatpush1.bf16.msra.mxu0 0
    %173 = vmatprep.subr.bf16.mxu0 0
    %174 = vmatpush1.bf16.msra.mxu0 0
    %175 = vmatprep.subr.bf16.mxu0 0
    %176 = vmatpush1.bf16.msra.mxu0 0
    %177 = vmatprep.subr.bf16.mxu0 0
    %178 = vmatpush1.bf16.msra.mxu0 0
    %179 = vmatprep.subr.bf16.mxu0 0
    %180 = vmatpush1.bf16.msra.mxu0 0
    %181 = vmatprep.subr.bf16.mxu0 0
    %182 = vmatpush1.bf16.msra.mxu0 0
    %183 = vmatprep.subr.bf16.mxu0 0
    %184 = vmatpush1.bf16.msra.mxu0 0
    %185 = vmatprep.subr.bf16.mxu0 0
    %186 = vmatpush1.bf16.msra.mxu0 0
    %187 = vmatprep.subr.bf16.mxu0 0
    %188 = vmatpush1.bf16.msra.mxu0 0
    %189 = vmatprep.mubr.bf16.mxu0 0
    %190 = vmatmul.mubr.bf16.gmra.mrb[0].mxu0 %v134
    %v191 = vpop.f32.mrb[0].mxu0
    %v192 = vadd.f32 %v118, %v191
    %v193 = vpop.f32.mrb[0].mxu0
    %v194 = vpop.f32.mrb[0].mxu0
    %v195 = vadd.f32 %v118, %v194
    %v196 = vpop.f32.mrb[0].mxu0
    %197 = vmatprep.mubr.bf16.mxu0 0
    %198 = vmatmul.mubr.bf16.gmra.mrb[0].mxu0 %v137
    %v199 = vpop.f32.mrb[0].mxu0
    %v200 = vadd.f32 %v118, %v199
    %v201 = vpop.f32.mrb[0].mxu0
    %v202 = vpop.f32.mrb[0].mxu0
    %v203 = vadd.f32 %v118, %v202
    %v204 = vpop.f32.mrb[0].mxu0
    %205 = vmatprep.mubr.bf16.mxu0 0
    %206 = vmatmul.mubr.bf16.gmra.mrb[0].mxu0 %v140
    %v207 = vpop.f32.mrb[0].mxu0
    %v208 = vadd.f32 %v118, %v207
    %v209 = vpop.f32.mrb[0].mxu0
    %v210 = vpop.f32.mrb[0].mxu0
    %v211 = vadd.f32 %v118, %v210
    %v212 = vpop.f32.mrb[0].mxu0
    %213 = vmatprep.mubr.bf16.mxu0 0
    %214 = vmatmul.mubr.bf16.gmra.mrb[0].mxu0 %v143
    %v215 = vpop.f32.mrb[0].mxu0
    %v216 = vadd.f32 %v118, %v215
    %v217 = vpop.f32.mrb[0].mxu0
    %v218 = vpop.f32.mrb[0].mxu0
    %v219 = vadd.f32 %v118, %v218
    %v220 = vpop.f32.mrb[0].mxu0
    %221 = vmatprep.mubr.bf16.mxu0 0
    %222 = vmatmul.mubr.bf16.gmra.mrb[0].mxu0 %v146
    %v223 = vpop.f32.mrb[0].mxu0
    %v224 = vadd.f32 %v118, %v223
    %v225 = vpop.f32.mrb[0].mxu0
    %v226 = vpop.f32.mrb[0].mxu0
    %v227 = vadd.f32 %v118, %v226
    %v228 = vpop.f32.mrb[0].mxu0
    %229 = vmatprep.mubr.bf16.mxu0 0
    %230 = vmatmul.mubr.bf16.gmra.mrb[0].mxu0 %v149
    %v231 = vpop.f32.mrb[0].mxu0
    %v232 = vadd.f32 %v118, %v231
    %v233 = vpop.f32.mrb[0].mxu0
    %v234 = vpop.f32.mrb[0].mxu0
    %v235 = vadd.f32 %v118, %v234
    %v236 = vpop.f32.mrb[0].mxu0
    %237 = vmatprep.mubr.bf16.mxu0 0
    %238 = vmatmul.mubr.bf16.gmra.mrb[0].mxu0 %v152
    %v239 = vpop.f32.mrb[0].mxu0
    %v240 = vadd.f32 %v118, %v239
    %v241 = vpop.f32.mrb[0].mxu0
    %v242 = vpop.f32.mrb[0].mxu0
    %v243 = vadd.f32 %v118, %v242
    %v244 = vpop.f32.mrb[0].mxu0
    %245 = vmatprep.mubr.bf16.mxu0 0
    %246 = vmatmul.mubr.bf16.gmra.mrb[0].mxu0 %v155
    %v247 = vpop.f32.mrb[0].mxu0
    %v248 = vadd.f32 %v118, %v247
    %v249 = vpop.f32.mrb[0].mxu0
    %v250 = vpop.f32.mrb[0].mxu0
    %v251 = vadd.f32 %v118, %v250
    %v252 = vpop.f32.mrb[0].mxu0
    %253 = vdwg.mxu0
    %v254 = vmax.f32 %v192, 0.0
    %v255 = vmax.f32 %v195, 0.0
    %v256 = vmax.f32 %v200, 0.0
    %v257 = vmax.f32 %v203, 0.0
    %v258 = vmax.f32 %v208, 0.0
    %v259 = vmax.f32 %v211, 0.0
    %v260 = vmax.f32 %v216, 0.0
    %v261 = vmax.f32 %v219, 0.0
    %v262 = vmax.f32 %v224, 0.0
    %v263 = vmax.f32 %v227, 0.0
    %v264 = vmax.f32 %v232, 0.0
    %v265 = vmax.f32 %v235, 0.0
    %v266 = vmax.f32 %v240, 0.0
    %v267 = vmax.f32 %v243, 0.0
    %v268 = vmax.f32 %v248, 0.0
    %v269 = vmax.f32 %v251, 0.0
    %v270 = vpack.c.bf16 %v255, %v254
    %v271 = vpack.c.bf16 %v257, %v256
    %v272 = vpack.c.bf16 %v259, %v258
    %v273 = vpack.c.bf16 %v261, %v260
    %v274 = vpack.c.bf16 %v263, %v262
    %v275 = vpack.c.bf16 %v265, %v264
    %v276 = vpack.c.bf16 %v267, %v266
    %v277 = vpack.c.bf16 %v269, %v268
    %v279 = vlaneseq
    %v280 = vshrl.u32 %v279, 7
    %v281 = vsub.s32 0, %v280
    %v282 = vrot.slane %v87, %v281
    %v300 = vunpack.c.l.b16 %v38
    %v301 = vunpack.c.l.b16 %v39
    %v302 = vunpack.c.l.b16 %v40
    %v303 = vunpack.c.l.b16 %v41
    %v304 = vunpack.c.l.b16 %v42
    %v305 = vunpack.c.l.b16 %v43
    %v306 = vunpack.c.l.b16 %v44
    %v307 = vunpack.c.l.b16 %v45
    %v308 = vunpack.c.l.b16 %v46
    %v309 = vunpack.c.l.b16 %v47
    %v310 = vunpack.c.l.b16 %v48
    %v311 = vunpack.c.l.b16 %v49
    %v312 = vunpack.c.l.b16 %v50
    %v313 = vunpack.c.l.b16 %v51
    %v314 = vunpack.c.l.b16 %v52
    %v315 = vunpack.c.l.b16 %v53
    %v316 = vpack.c.b16 %v301, %v300
    %v317 = vpack.c.b16 %v303, %v302
    %v318 = vpack.c.b16 %v305, %v304
    %v319 = vpack.c.b16 %v307, %v306
    %v320 = vpack.c.b16 %v309, %v308
    %v321 = vpack.c.b16 %v311, %v310
    %v322 = vpack.c.b16 %v313, %v312
    %v323 = vpack.c.b16 %v315, %v314
    %332 = vmatprep.subr.bf16.mxu0 0
    %333 = vmatpush1.bf16.msra.mxu0 %v316
    %334 = vmatprep.subr.bf16.mxu0 0
    %335 = vmatpush1.bf16.msra.mxu0 %v317
    %336 = vmatprep.subr.bf16.mxu0 0
    %337 = vmatpush1.bf16.msra.mxu0 %v318
    %338 = vmatprep.subr.bf16.mxu0 0
    %339 = vmatpush1.bf16.msra.mxu0 %v319
    %340 = vmatprep.subr.bf16.mxu0 0
    %341 = vmatpush1.bf16.msra.mxu0 %v320
    %342 = vmatprep.subr.bf16.mxu0 0
    %343 = vmatpush1.bf16.msra.mxu0 %v321
    %344 = vmatprep.subr.bf16.mxu0 0
    %345 = vmatpush1.bf16.msra.mxu0 %v322
    %346 = vmatprep.subr.bf16.mxu0 0
    %347 = vmatpush1.bf16.msra.mxu0 %v323
    %348 = vmatprep.subr.bf16.mxu0 0
    %349 = vmatpush1.bf16.msra.mxu0 0
    %350 = vmatprep.subr.bf16.mxu0 0
    %351 = vmatpush1.bf16.msra.mxu0 0
    %352 = vmatprep.subr.bf16.mxu0 0
    %353 = vmatpush1.bf16.msra.mxu0 0
    %354 = vmatprep.subr.bf16.mxu0 0
    %355 = vmatpush1.bf16.msra.mxu0 0
    %356 = vmatprep.subr.bf16.mxu0 0
    %357 = vmatpush1.bf16.msra.mxu0 0
    %358 = vmatprep.subr.bf16.mxu0 0
    %359 = vmatpush1.bf16.msra.mxu0 0
    %360 = vmatprep.subr.bf16.mxu0 0
    %361 = vmatpush1.bf16.msra.mxu0 0
    %362 = vmatprep.subr.bf16.mxu0 0
    %363 = vmatpush1.bf16.msra.mxu0 0
    %364 = vmatprep.mubr.bf16.mxu0 0
    %365 = vmatmul.mubr.bf16.gmra.mrb[0].mxu0 %v270
    %v366 = vpop.f32.mrb[0].mxu0
    %v367 = vadd.f32 %v282, %v366
    %v368 = vpop.f32.mrb[0].mxu0
    %v369 = vpop.f32.mrb[0].mxu0
    %v370 = vadd.f32 %v282, %v369
    %v371 = vpop.f32.mrb[0].mxu0
    %372 = vmatprep.mubr.bf16.mxu0 0
    %373 = vmatmul.mubr.bf16.gmra.mrb[0].mxu0 %v271
    %v374 = vpop.f32.mrb[0].mxu0
    %v375 = vadd.f32 %v282, %v374
    %v376 = vpop.f32.mrb[0].mxu0
    %v377 = vpop.f32.mrb[0].mxu0
    %v378 = vadd.f32 %v282, %v377
    %v379 = vpop.f32.mrb[0].mxu0
    %380 = vmatprep.mubr.bf16.mxu0 0
    %381 = vmatmul.mubr.bf16.gmra.mrb[0].mxu0 %v272
    %v382 = vpop.f32.mrb[0].mxu0
    %v383 = vadd.f32 %v282, %v382
    %v384 = vpop.f32.mrb[0].mxu0
    %v385 = vpop.f32.mrb[0].mxu0
    %v386 = vadd.f32 %v282, %v385
    %v387 = vpop.f32.mrb[0].mxu0
    %388 = vmatprep.mubr.bf16.mxu0 0
    %389 = vmatmul.mubr.bf16.gmra.mrb[0].mxu0 %v273
    %v390 = vpop.f32.mrb[0].mxu0
    %v391 = vadd.f32 %v282, %v390
    %v392 = vpop.f32.mrb[0].mxu0
    %v393 = vpop.f32.mrb[0].mxu0
    %v394 = vadd.f32 %v282, %v393
    %v395 = vpop.f32.mrb[0].mxu0
    %396 = vmatprep.mubr.bf16.mxu0 0
    %397 = vmatmul.mubr.bf16.gmra.mrb[0].mxu0 %v274
    %v398 = vpop.f32.mrb[0].mxu0
    %v399 = vadd.f32 %v282, %v398
    %v400 = vpop.f32.mrb[0].mxu0
    %v401 = vpop.f32.mrb[0].mxu0
    %v402 = vadd.f32 %v282, %v401
    %v403 = vpop.f32.mrb[0].mxu0
    %404 = vmatprep.mubr.bf16.mxu0 0
    %405 = vmatmul.mubr.bf16.gmra.mrb[0].mxu0 %v275
    %v406 = vpop.f32.mrb[0].mxu0
    %v407 = vadd.f32 %v282, %v406
    %v408 = vpop.f32.mrb[0].mxu0
    %v409 = vpop.f32.mrb[0].mxu0
    %v410 = vadd.f32 %v282, %v409
    %v411 = vpop.f32.mrb[0].mxu0
    %412 = vmatprep.mubr.bf16.mxu0 0
    %413 = vmatmul.mubr.bf16.gmra.mrb[0].mxu0 %v276
    %v414 = vpop.f32.mrb[0].mxu0
    %v415 = vadd.f32 %v282, %v414
    %v416 = vpop.f32.mrb[0].mxu0
    %v417 = vpop.f32.mrb[0].mxu0
    %v418 = vadd.f32 %v282, %v417
    %v419 = vpop.f32.mrb[0].mxu0
    %420 = vmatprep.mubr.bf16.mxu0 0
    %421 = vmatmul.mubr.bf16.gmra.mrb[0].mxu0 %v277
    %v422 = vpop.f32.mrb[0].mxu0
    %v423 = vadd.f32 %v282, %v422
    %v424 = vpop.f32.mrb[0].mxu0
    %v425 = vpop.f32.mrb[0].mxu0
    %v426 = vadd.f32 %v282, %v425
    %v427 = vpop.f32.mrb[0].mxu0
    %428 = vdwg.mxu0
    %v429 = vmax.f32 %v367, 0.0
    %v430 = vmax.f32 %v370, 0.0
    %v431 = vmax.f32 %v375, 0.0
    %v432 = vmax.f32 %v378, 0.0
    %v433 = vmax.f32 %v383, 0.0
    %v434 = vmax.f32 %v386, 0.0
    %v435 = vmax.f32 %v391, 0.0
    %v436 = vmax.f32 %v394, 0.0
    %v437 = vmax.f32 %v399, 0.0
    %v438 = vmax.f32 %v402, 0.0
    %v439 = vmax.f32 %v407, 0.0
    %v440 = vmax.f32 %v410, 0.0
    %v441 = vmax.f32 %v415, 0.0
    %v442 = vmax.f32 %v418, 0.0
    %v443 = vmax.f32 %v423, 0.0
    %v444 = vmax.f32 %v426, 0.0
    %v445 = vpack.c.bf16 %v430, %v429
    %v446 = vpack.c.bf16 %v432, %v431
    %v447 = vpack.c.bf16 %v434, %v433
    %v448 = vpack.c.bf16 %v436, %v435
    %v449 = vpack.c.bf16 %v438, %v437
    %v450 = vpack.c.bf16 %v440, %v439
    %v451 = vpack.c.bf16 %v442, %v441
    %v452 = vpack.c.bf16 %v444, %v443
    %v454 = vlaneseq
    %v455 = vshrl.u32 %v454, 7
    %v456 = vsub.s32 0, %v455
    %v457 = vrot.slane %v88, %v456
    %v475 = vunpack.c.l.b16 %v54
    %v476 = vunpack.c.l.b16 %v55
    %v477 = vunpack.c.l.b16 %v56
    %v478 = vunpack.c.l.b16 %v57
    %v479 = vunpack.c.l.b16 %v58
    %v480 = vunpack.c.l.b16 %v59
    %v481 = vunpack.c.l.b16 %v60
    %v482 = vunpack.c.l.b16 %v61
    %v483 = vunpack.c.l.b16 %v62
    %v484 = vunpack.c.l.b16 %v63
    %v485 = vunpack.c.l.b16 %v64
    %v486 = vunpack.c.l.b16 %v65
    %v487 = vunpack.c.l.b16 %v66
    %v488 = vunpack.c.l.b16 %v67
    %v489 = vunpack.c.l.b16 %v68
    %v490 = vunpack.c.l.b16 %v69
    %v491 = vpack.c.b16 %v476, %v475
    %v492 = vpack.c.b16 %v478, %v477
    %v493 = vpack.c.b16 %v480, %v479
    %v494 = vpack.c.b16 %v482, %v481
    %v495 = vpack.c.b16 %v484, %v483
    %v496 = vpack.c.b16 %v486, %v485
    %v497 = vpack.c.b16 %v488, %v487
    %v498 = vpack.c.b16 %v490, %v489
    %507 = vmatprep.subr.bf16.mxu0 0
    %508 = vmatpush1.bf16.msra.mxu0 %v491
    %509 = vmatprep.subr.bf16.mxu0 0
    %510 = vmatpush1.bf16.msra.mxu0 %v492
    %511 = vmatprep.subr.bf16.mxu0 0
    %512 = vmatpush1.bf16.msra.mxu0 %v493
    %513 = vmatprep.subr.bf16.mxu0 0
    %514 = vmatpush1.bf16.msra.mxu0 %v494
    %515 = vmatprep.subr.bf16.mxu0 0
    %516 = vmatpush1.bf16.msra.mxu0 %v495
    %517 = vmatprep.subr.bf16.mxu0 0
    %518 = vmatpush1.bf16.msra.mxu0 %v496
    %519 = vmatprep.subr.bf16.mxu0 0
    %520 = vmatpush1.bf16.msra.mxu0 %v497
    %521 = vmatprep.subr.bf16.mxu0 0
    %522 = vmatpush1.bf16.msra.mxu0 %v498
    %523 = vmatprep.subr.bf16.mxu0 0
    %524 = vmatpush1.bf16.msra.mxu0 0
    %525 = vmatprep.subr.bf16.mxu0 0
    %526 = vmatpush1.bf16.msra.mxu0 0
    %527 = vmatprep.subr.bf16.mxu0 0
    %528 = vmatpush1.bf16.msra.mxu0 0
    %529 = vmatprep.subr.bf16.mxu0 0
    %530 = vmatpush1.bf16.msra.mxu0 0
    %531 = vmatprep.subr.bf16.mxu0 0
    %532 = vmatpush1.bf16.msra.mxu0 0
    %533 = vmatprep.subr.bf16.mxu0 0
    %534 = vmatpush1.bf16.msra.mxu0 0
    %535 = vmatprep.subr.bf16.mxu0 0
    %536 = vmatpush1.bf16.msra.mxu0 0
    %537 = vmatprep.subr.bf16.mxu0 0
    %538 = vmatpush1.bf16.msra.mxu0 0
    %539 = vmatprep.mubr.bf16.mxu0 0
    %540 = vmatmul.mubr.bf16.gmra.mrb[0].mxu0 %v445
    %v541 = vpop.f32.mrb[0].mxu0
    %v542 = vadd.f32 %v457, %v541
    %v543 = vpop.f32.mrb[0].mxu0
    %v544 = vpop.f32.mrb[0].mxu0
    %v545 = vadd.f32 %v457, %v544
    %v546 = vpop.f32.mrb[0].mxu0
    %547 = vmatprep.mubr.bf16.mxu0 0
    %548 = vmatmul.mubr.bf16.gmra.mrb[0].mxu0 %v446
    %v549 = vpop.f32.mrb[0].mxu0
    %v550 = vadd.f32 %v457, %v549
    %v551 = vpop.f32.mrb[0].mxu0
    %v552 = vpop.f32.mrb[0].mxu0
    %v553 = vadd.f32 %v457, %v552
    %v554 = vpop.f32.mrb[0].mxu0
    %555 = vmatprep.mubr.bf16.mxu0 0
    %556 = vmatmul.mubr.bf16.gmra.mrb[0].mxu0 %v447
    %v557 = vpop.f32.mrb[0].mxu0
    %v558 = vadd.f32 %v457, %v557
    %v559 = vpop.f32.mrb[0].mxu0
    %v560 = vpop.f32.mrb[0].mxu0
    %v561 = vadd.f32 %v457, %v560
    %v562 = vpop.f32.mrb[0].mxu0
    %563 = vmatprep.mubr.bf16.mxu0 0
    %564 = vmatmul.mubr.bf16.gmra.mrb[0].mxu0 %v448
    %v565 = vpop.f32.mrb[0].mxu0
    %v566 = vadd.f32 %v457, %v565
    %v567 = vpop.f32.mrb[0].mxu0
    %v568 = vpop.f32.mrb[0].mxu0
    %v569 = vadd.f32 %v457, %v568
    %v570 = vpop.f32.mrb[0].mxu0
    %571 = vmatprep.mubr.bf16.mxu0 0
    %572 = vmatmul.mubr.bf16.gmra.mrb[0].mxu0 %v449
    %v573 = vpop.f32.mrb[0].mxu0
    %v574 = vadd.f32 %v457, %v573
    %v575 = vpop.f32.mrb[0].mxu0
    %v576 = vpop.f32.mrb[0].mxu0
    %v577 = vadd.f32 %v457, %v576
    %v578 = vpop.f32.mrb[0].mxu0
    %579 = vmatprep.mubr.bf16.mxu0 0
    %580 = vmatmul.mubr.bf16.gmra.mrb[0].mxu0 %v450
    %v581 = vpop.f32.mrb[0].mxu0
    %v582 = vadd.f32 %v457, %v581
    %v583 = vpop.f32.mrb[0].mxu0
    %v584 = vpop.f32.mrb[0].mxu0
    %v585 = vadd.f32 %v457, %v584
    %v586 = vpop.f32.mrb[0].mxu0
    %587 = vmatprep.mubr.bf16.mxu0 0
    %588 = vmatmul.mubr.bf16.gmra.mrb[0].mxu0 %v451
    %v589 = vpop.f32.mrb[0].mxu0
    %v590 = vadd.f32 %v457, %v589
    %v591 = vpop.f32.mrb[0].mxu0
    %v592 = vpop.f32.mrb[0].mxu0
    %v593 = vadd.f32 %v457, %v592
    %v594 = vpop.f32.mrb[0].mxu0
    %595 = vmatprep.mubr.bf16.mxu0 0
    %596 = vmatmul.mubr.bf16.gmra.mrb[0].mxu0 %v452
    %v597 = vpop.f32.mrb[0].mxu0
    %v598 = vadd.f32 %v457, %v597
    %v599 = vpop.f32.mrb[0].mxu0
    %v600 = vpop.f32.mrb[0].mxu0
    %v601 = vadd.f32 %v457, %v600
    %v602 = vpop.f32.mrb[0].mxu0
    %603 = vdwg.mxu0
    %v604 = vmax.f32 %v542, 0.0
    %v605 = vmax.f32 %v545, 0.0
    %v606 = vmax.f32 %v550, 0.0
    %v607 = vmax.f32 %v553, 0.0
    %v608 = vmax.f32 %v558, 0.0
    %v609 = vmax.f32 %v561, 0.0
    %v610 = vmax.f32 %v566, 0.0
    %v611 = vmax.f32 %v569, 0.0
    %v612 = vmax.f32 %v574, 0.0
    %v613 = vmax.f32 %v577, 0.0
    %v614 = vmax.f32 %v582, 0.0
    %v615 = vmax.f32 %v585, 0.0
    %v616 = vmax.f32 %v590, 0.0
    %v617 = vmax.f32 %v593, 0.0
    %v618 = vmax.f32 %v598, 0.0
    %v619 = vmax.f32 %v601, 0.0
    %v620 = vpack.c.bf16 %v605, %v604
    %v621 = vpack.c.bf16 %v607, %v606
    %v622 = vpack.c.bf16 %v609, %v608
    %v623 = vpack.c.bf16 %v611, %v610
    %v624 = vpack.c.bf16 %v613, %v612
    %v625 = vpack.c.bf16 %v615, %v614
    %v626 = vpack.c.bf16 %v617, %v616
    %v627 = vpack.c.bf16 %v619, %v618
    %v629 = vlaneseq
    %v630 = vshrl.u32 %v629, 7
    %v631 = vsub.s32 0, %v630
    %v632 = vrot.slane %v89, %v631
    %v650 = vunpack.c.l.b16 %v70
    %v651 = vunpack.c.l.b16 %v71
    %v652 = vunpack.c.l.b16 %v72
    %v653 = vunpack.c.l.b16 %v73
    %v654 = vunpack.c.l.b16 %v74
    %v655 = vunpack.c.l.b16 %v75
    %v656 = vunpack.c.l.b16 %v76
    %v657 = vunpack.c.l.b16 %v77
    %v658 = vunpack.c.l.b16 %v78
    %v659 = vunpack.c.l.b16 %v79
    %v660 = vunpack.c.l.b16 %v80
    %v661 = vunpack.c.l.b16 %v81
    %v662 = vunpack.c.l.b16 %v82
    %v663 = vunpack.c.l.b16 %v83
    %v664 = vunpack.c.l.b16 %v84
    %v665 = vunpack.c.l.b16 %v85
    %v666 = vpack.c.b16 %v651, %v650
    %v667 = vpack.c.b16 %v653, %v652
    %v668 = vpack.c.b16 %v655, %v654
    %v669 = vpack.c.b16 %v657, %v656
    %v670 = vpack.c.b16 %v659, %v658
    %v671 = vpack.c.b16 %v661, %v660
    %v672 = vpack.c.b16 %v663, %v662
    %v673 = vpack.c.b16 %v665, %v664
    %682 = vmatprep.subr.bf16.mxu0 0
    %683 = vmatpush1.bf16.msra.mxu0 %v666
    %684 = vmatprep.subr.bf16.mxu0 0
    %685 = vmatpush1.bf16.msra.mxu0 %v667
    %686 = vmatprep.subr.bf16.mxu0 0
    %687 = vmatpush1.bf16.msra.mxu0 %v668
    %688 = vmatprep.subr.bf16.mxu0 0
    %689 = vmatpush1.bf16.msra.mxu0 %v669
    %690 = vmatprep.subr.bf16.mxu0 0
    %691 = vmatpush1.bf16.msra.mxu0 %v670
    %692 = vmatprep.subr.bf16.mxu0 0
    %693 = vmatpush1.bf16.msra.mxu0 %v671
    %694 = vmatprep.subr.bf16.mxu0 0
    %695 = vmatpush1.bf16.msra.mxu0 %v672
    %696 = vmatprep.subr.bf16.mxu0 0
    %697 = vmatpush1.bf16.msra.mxu0 %v673
    %698 = vmatprep.subr.bf16.mxu0 0
    %699 = vmatpush1.bf16.msra.mxu0 0
    %700 = vmatprep.subr.bf16.mxu0 0
    %701 = vmatpush1.bf16.msra.mxu0 0
    %702 = vmatprep.subr.bf16.mxu0 0
    %703 = vmatpush1.bf16.msra.mxu0 0
    %704 = vmatprep.subr.bf16.mxu0 0
    %705 = vmatpush1.bf16.msra.mxu0 0
    %706 = vmatprep.subr.bf16.mxu0 0
    %707 = vmatpush1.bf16.msra.mxu0 0
    %708 = vmatprep.subr.bf16.mxu0 0
    %709 = vmatpush1.bf16.msra.mxu0 0
    %710 = vmatprep.subr.bf16.mxu0 0
    %711 = vmatpush1.bf16.msra.mxu0 0
    %712 = vmatprep.subr.bf16.mxu0 0
    %713 = vmatpush1.bf16.msra.mxu0 0
    %714 = vmatprep.mubr.bf16.mxu0 0
    %715 = vmatmul.mubr.bf16.gmra.mrb[0].mxu0 %v620
    %v716 = vpop.f32.mrb[0].mxu0
    %v717 = vadd.f32 %v632, %v716
    %v718 = vpop.f32.mrb[0].mxu0
    %v719 = vpop.f32.mrb[0].mxu0
    %v720 = vadd.f32 %v632, %v719
    %v721 = vpop.f32.mrb[0].mxu0
    %722 = vmatprep.mubr.bf16.mxu0 0
    %723 = vmatmul.mubr.bf16.gmra.mrb[0].mxu0 %v621
    %v724 = vpop.f32.mrb[0].mxu0
    %v725 = vadd.f32 %v632, %v724
    %v726 = vpop.f32.mrb[0].mxu0
    %v727 = vpop.f32.mrb[0].mxu0
    %v728 = vadd.f32 %v632, %v727
    %v729 = vpop.f32.mrb[0].mxu0
    %730 = vmatprep.mubr.bf16.mxu0 0
    %731 = vmatmul.mubr.bf16.gmra.mrb[0].mxu0 %v622
    %v732 = vpop.f32.mrb[0].mxu0
    %v733 = vadd.f32 %v632, %v732
    %v734 = vpop.f32.mrb[0].mxu0
    %v735 = vpop.f32.mrb[0].mxu0
    %v736 = vadd.f32 %v632, %v735
    %v737 = vpop.f32.mrb[0].mxu0
    %738 = vmatprep.mubr.bf16.mxu0 0
    %739 = vmatmul.mubr.bf16.gmra.mrb[0].mxu0 %v623
    %v740 = vpop.f32.mrb[0].mxu0
    %v741 = vadd.f32 %v632, %v740
    %v742 = vpop.f32.mrb[0].mxu0
    %v743 = vpop.f32.mrb[0].mxu0
    %v744 = vadd.f32 %v632, %v743
    %v745 = vpop.f32.mrb[0].mxu0
    %746 = vmatprep.mubr.bf16.mxu0 0
    %747 = vmatmul.mubr.bf16.gmra.mrb[0].mxu0 %v624
    %v748 = vpop.f32.mrb[0].mxu0
    %v749 = vadd.f32 %v632, %v748
    %v750 = vpop.f32.mrb[0].mxu0
    %v751 = vpop.f32.mrb[0].mxu0
    %v752 = vadd.f32 %v632, %v751
    %v753 = vpop.f32.mrb[0].mxu0
    %754 = vmatprep.mubr.bf16.mxu0 0
    %755 = vmatmul.mubr.bf16.gmra.mrb[0].mxu0 %v625
    %v756 = vpop.f32.mrb[0].mxu0
    %v757 = vadd.f32 %v632, %v756
    %v758 = vpop.f32.mrb[0].mxu0
    %v759 = vpop.f32.mrb[0].mxu0
    %v760 = vadd.f32 %v632, %v759
    %v761 = vpop.f32.mrb[0].mxu0
    %762 = vmatprep.mubr.bf16.mxu0 0
    %763 = vmatmul.mubr.bf16.gmra.mrb[0].mxu0 %v626
    %v764 = vpop.f32.mrb[0].mxu0
    %v765 = vadd.f32 %v632, %v764
    %v766 = vpop.f32.mrb[0].mxu0
    %v767 = vpop.f32.mrb[0].mxu0
    %v768 = vadd.f32 %v632, %v767
    %v769 = vpop.f32.mrb[0].mxu0
    %770 = vmatprep.mubr.bf16.mxu0 0
    %771 = vmatmul.mubr.bf16.gmra.mrb[0].mxu0 %v627
    %v772 = vpop.f32.mrb[0].mxu0
    %v773 = vadd.f32 %v632, %v772
    %v774 = vpop.f32.mrb[0].mxu0
    %v775 = vpop.f32.mrb[0].mxu0
    %v776 = vadd.f32 %v632, %v775
    %v777 = vpop.f32.mrb[0].mxu0
    %778 = vdwg.mxu0
    %779 = vst [vmem:[#allocation2] sm:$0xff] %v717
    %780 = vst [vmem:[#allocation2 + $0x8] sm:$0xff] %v720
    %781 = vst [vmem:[#allocation2 + $0x10] sm:$0xff] %v725
    %782 = vst [vmem:[#allocation2 + $0x18] sm:$0xff] %v728
    %783 = vst [vmem:[#allocation2 + $0x20] sm:$0xff] %v733
    %784 = vst [vmem:[#allocation2 + $0x28] sm:$0xff] %v736
    %785 = vst [vmem:[#allocation2 + $0x30] sm:$0xff] %v741
    %786 = vst [vmem:[#allocation2 + $0x38] sm:$0xff] %v744
    %787 = vst [vmem:[#allocation2 + $0x40] sm:$0xff] %v749
    %788 = vst [vmem:[#allocation2 + $0x48] sm:$0xff] %v752
    %789 = vst [vmem:[#allocation2 + $0x50] sm:$0xff] %v757
    %790 = vst [vmem:[#allocation2 + $0x58] sm:$0xff] %v760
    %791 = vst [vmem:[#allocation2 + $0x60] sm:$0xff] %v765
    %792 = vst [vmem:[#allocation2 + $0x68] sm:$0xff] %v768
    %793 = vst [vmem:[#allocation2 + $0x70] sm:$0xff] %v773
    %794 = vst [vmem:[#allocation2 + $0x78] sm:$0xff] %v776
    %v795 = vld [vmem:[%s0 + $0x80] sm:$0xff]
    %v796 = vld [vmem:[%s0 + $0x88] sm:$0xff]
    %v797 = vld [vmem:[%s0 + $0x90] sm:$0xff]
    %v798 = vld [vmem:[%s0 + $0x98] sm:$0xff]
    %v799 = vld [vmem:[%s0 + $0xa0] sm:$0xff]
    %v800 = vld [vmem:[%s0 + $0xa8] sm:$0xff]
    %v801 = vld [vmem:[%s0 + $0xb0] sm:$0xff]
    %v802 = vld [vmem:[%s0 + $0xb8] sm:$0xff]
    %v803 = vld [vmem:[%s0 + $0xc0] sm:$0xff]
    %v804 = vld [vmem:[%s0 + $0xc8] sm:$0xff]
    %v805 = vld [vmem:[%s0 + $0xd0] sm:$0xff]
    %v806 = vld [vmem:[%s0 + $0xd8] sm:$0xff]
    %v807 = vld [vmem:[%s0 + $0xe0] sm:$0xff]
    %v808 = vld [vmem:[%s0 + $0xe8] sm:$0xff]
    %v809 = vld [vmem:[%s0 + $0xf0] sm:$0xff]
    %v810 = vld [vmem:[%s0 + $0xf8] sm:$0xff]
    %v811 = vpack.c.bf16 %v796, %v795
    %v812 = vpack.c.bf16 %v798, %v797
    %v813 = vpack.c.bf16 %v800, %v799
    %v814 = vpack.c.bf16 %v802, %v801
    %v815 = vpack.c.bf16 %v804, %v803
    %v816 = vpack.c.bf16 %v806, %v805
    %v817 = vpack.c.bf16 %v808, %v807
    %v818 = vpack.c.bf16 %v810, %v809
    %v820 = vsel %vm132, %v811, 0
    %v823 = vsel %vm132, %v812, 0
    %v826 = vsel %vm132, %v813, 0
    %v829 = vsel %vm132, %v814, 0
    %v832 = vsel %vm132, %v815, 0
    %v835 = vsel %vm132, %v816, 0
    %v838 = vsel %vm132, %v817, 0
    %v841 = vsel %vm132, %v818, 0
    %843 = vmatprep.subr.bf16.mxu0 0
    %844 = vmatpush1.bf16.msra.mxu0 %v128
    %845 = vmatprep.subr.bf16.mxu0 0
    %846 = vmatpush1.bf16.msra.mxu0 %v129
    %847 = vmatprep.subr.bf16.mxu0 0
    %848 = vmatpush1.bf16.msra.mxu0 0
    %849 = vmatprep.subr.bf16.mxu0 0
    %850 = vmatpush1.bf16.msra.mxu0 0
    %851 = vmatprep.subr.bf16.mxu0 0
    %852 = vmatpush1.bf16.msra.mxu0 0
    %853 = vmatprep.subr.bf16.mxu0 0
    %854 = vmatpush1.bf16.msra.mxu0 0
    %855 = vmatprep.subr.bf16.mxu0 0
    %856 = vmatpush1.bf16.msra.mxu0 0
    %857 = vmatprep.subr.bf16.mxu0 0
    %858 = vmatpush1.bf16.msra.mxu0 0
    %859 = vmatprep.subr.bf16.mxu0 0
    %860 = vmatpush1.bf16.msra.mxu0 0
    %861 = vmatprep.subr.bf16.mxu0 0
    %862 = vmatpush1.bf16.msra.mxu0 0
    %863 = vmatprep.subr.bf16.mxu0 0
    %864 = vmatpush1.bf16.msra.mxu0 0
    %865 = vmatprep.subr.bf16.mxu0 0
    %866 = vmatpush1.bf16.msra.mxu0 0
    %867 = vmatprep.subr.bf16.mxu0 0
    %868 = vmatpush1.bf16.msra.mxu0 0
    %869 = vmatprep.subr.bf16.mxu0 0
    %870 = vmatpush1.bf16.msra.mxu0 0
    %871 = vmatprep.subr.bf16.mxu0 0
    %872 = vmatpush1.bf16.msra.mxu0 0
    %873 = vmatprep.subr.bf16.mxu0 0
    %874 = vmatpush1.bf16.msra.mxu0 0
    %875 = vmatprep.mubr.bf16.mxu0 0
    %876 = vmatmul.mubr.bf16.gmra.mrb[0].mxu0 %v820
    %v877 = vpop.f32.mrb[0].mxu0
    %v878 = vadd.f32 %v118, %v877
    %v879 = vpop.f32.mrb[0].mxu0
    %v880 = vpop.f32.mrb[0].mxu0
    %v881 = vadd.f32 %v118, %v880
    %v882 = vpop.f32.mrb[0].mxu0
    %883 = vmatprep.mubr.bf16.mxu0 0
    %884 = vmatmul.mubr.bf16.gmra.mrb[0].mxu0 %v823
    %v885 = vpop.f32.mrb[0].mxu0
    %v886 = vadd.f32 %v118, %v885
    %v887 = vpop.f32.mrb[0].mxu0
    %v888 = vpop.f32.mrb[0].mxu0
    %v889 = vadd.f32 %v118, %v888
    %v890 = vpop.f32.mrb[0].mxu0
    %891 = vmatprep.mubr.bf16.mxu0 0
    %892 = vmatmul.mubr.bf16.gmra.mrb[0].mxu0 %v826
    %v893 = vpop.f32.mrb[0].mxu0
    %v894 = vadd.f32 %v118, %v893
    %v895 = vpop.f32.mrb[0].mxu0
    %v896 = vpop.f32.mrb[0].mxu0
    %v897 = vadd.f32 %v118, %v896
    %v898 = vpop.f32.mrb[0].mxu0
    %899 = vmatprep.mubr.bf16.mxu0 0
    %900 = vmatmul.mubr.bf16.gmra.mrb[0].mxu0 %v829
    %v901 = vpop.f32.mrb[0].mxu0
    %v902 = vadd.f32 %v118, %v901
    %v903 = vpop.f32.mrb[0].mxu0
    %v904 = vpop.f32.mrb[0].mxu0
    %v905 = vadd.f32 %v118, %v904
    %v906 = vpop.f32.mrb[0].mxu0
    %907 = vmatprep.mubr.bf16.mxu0 0
    %908 = vmatmul.mubr.bf16.gmra.mrb[0].mxu0 %v832
    %v909 = vpop.f32.mrb[0].mxu0
    %v910 = vadd.f32 %v118, %v909
    %v911 = vpop.f32.mrb[0].mxu0
    %v912 = vpop.f32.mrb[0].mxu0
    %v913 = vadd.f32 %v118, %v912
    %v914 = vpop.f32.mrb[0].mxu0
    %915 = vmatprep.mubr.bf16.mxu0 0
    %916 = vmatmul.mubr.bf16.gmra.mrb[0].mxu0 %v835
    %v917 = vpop.f32.mrb[0].mxu0
    %v918 = vadd.f32 %v118, %v917
    %v919 = vpop.f32.mrb[0].mxu0
    %v920 = vpop.f32.mrb[0].mxu0
    %v921 = vadd.f32 %v118, %v920
    %v922 = vpop.f32.mrb[0].mxu0
    %923 = vmatprep.mubr.bf16.mxu0 0
    %924 = vmatmul.mubr.bf16.gmra.mrb[0].mxu0 %v838
    %v925 = vpop.f32.mrb[0].mxu0
    %v926 = vadd.f32 %v118, %v925
    %v927 = vpop.f32.mrb[0].mxu0
    %v928 = vpop.f32.mrb[0].mxu0
    %v929 = vadd.f32 %v118, %v928
    %v930 = vpop.f32.mrb[0].mxu0
    %931 = vmatprep.mubr.bf16.mxu0 0
    %932 = vmatmul.mubr.bf16.gmra.mrb[0].mxu0 %v841
    %v933 = vpop.f32.mrb[0].mxu0
    %v934 = vadd.f32 %v118, %v933
    %v935 = vpop.f32.mrb[0].mxu0
    %v936 = vpop.f32.mrb[0].mxu0
    %v937 = vadd.f32 %v118, %v936
    %v938 = vpop.f32.mrb[0].mxu0
    %939 = vdwg.mxu0
    %v940 = vmax.f32 %v878, 0.0
    %v941 = vmax.f32 %v881, 0.0
    %v942 = vmax.f32 %v886, 0.0
    %v943 = vmax.f32 %v889, 0.0
    %v944 = vmax.f32 %v894, 0.0
    %v945 = vmax.f32 %v897, 0.0
    %v946 = vmax.f32 %v902, 0.0
    %v947 = vmax.f32 %v905, 0.0
    %v948 = vmax.f32 %v910, 0.0
    %v949 = vmax.f32 %v913, 0.0
    %v950 = vmax.f32 %v918, 0.0
    %v951 = vmax.f32 %v921, 0.0
    %v952 = vmax.f32 %v926, 0.0
    %v953 = vmax.f32 %v929, 0.0
    %v954 = vmax.f32 %v934, 0.0
    %v955 = vmax.f32 %v937, 0.0
    %v956 = vpack.c.bf16 %v941, %v940
    %v957 = vpack.c.bf16 %v943, %v942
    %v958 = vpack.c.bf16 %v945, %v944
    %v959 = vpack.c.bf16 %v947, %v946
    %v960 = vpack.c.bf16 %v949, %v948
    %v961 = vpack.c.bf16 %v951, %v950
    %v962 = vpack.c.bf16 %v953, %v952
    %v963 = vpack.c.bf16 %v955, %v954
    %964 = vmatprep.subr.bf16.mxu0 0
    %965 = vmatpush1.bf16.msra.mxu0 %v316
    %966 = vmatprep.subr.bf16.mxu0 0
    %967 = vmatpush1.bf16.msra.mxu0 %v317
    %968 = vmatprep.subr.bf16.mxu0 0
    %969 = vmatpush1.bf16.msra.mxu0 %v318
    %970 = vmatprep.subr.bf16.mxu0 0
    %971 = vmatpush1.bf16.msra.mxu0 %v319
    %972 = vmatprep.subr.bf16.mxu0 0
    %973 = vmatpush1.bf16.msra.mxu0 %v320
    %974 = vmatprep.subr.bf16.mxu0 0
    %975 = vmatpush1.bf16.msra.mxu0 %v321
    %976 = vmatprep.subr.bf16.mxu0 0
    %977 = vmatpush1.bf16.msra.mxu0 %v322
    %978 = vmatprep.subr.bf16.mxu0 0
    %979 = vmatpush1.bf16.msra.mxu0 %v323
    %980 = vmatprep.subr.bf16.mxu0 0
    %981 = vmatpush1.bf16.msra.mxu0 0
    %982 = vmatprep.subr.bf16.mxu0 0
    %983 = vmatpush1.bf16.msra.mxu0 0
    %984 = vmatprep.subr.bf16.mxu0 0
    %985 = vmatpush1.bf16.msra.mxu0 0
    %986 = vmatprep.subr.bf16.mxu0 0
    %987 = vmatpush1.bf16.msra.mxu0 0
    %988 = vmatprep.subr.bf16.mxu0 0
    %989 = vmatpush1.bf16.msra.mxu0 0
    %990 = vmatprep.subr.bf16.mxu0 0
    %991 = vmatpush1.bf16.msra.mxu0 0
    %992 = vmatprep.subr.bf16.mxu0 0
    %993 = vmatpush1.bf16.msra.mxu0 0
    %994 = vmatprep.subr.bf16.mxu0 0
    %995 = vmatpush1.bf16.msra.mxu0 0
    %996 = vmatprep.mubr.bf16.mxu0 0
    %997 = vmatmul.mubr.bf16.gmra.mrb[0].mxu0 %v956
    %v998 = vpop.f32.mrb[0].mxu0
    %v999 = vadd.f32 %v282, %v998
    %v1000 = vpop.f32.mrb[0].mxu0
    %v1001 = vpop.f32.mrb[0].mxu0
    %v1002 = vadd.f32 %v282, %v1001
    %v1003 = vpop.f32.mrb[0].mxu0
    %1004 = vmatprep.mubr.bf16.mxu0 0
    %1005 = vmatmul.mubr.bf16.gmra.mrb[0].mxu0 %v957
    %v1006 = vpop.f32.mrb[0].mxu0
    %v1007 = vadd.f32 %v282, %v1006
    %v1008 = vpop.f32.mrb[0].mxu0
    %v1009 = vpop.f32.mrb[0].mxu0
    %v1010 = vadd.f32 %v282, %v1009
    %v1011 = vpop.f32.mrb[0].mxu0
    %1012 = vmatprep.mubr.bf16.mxu0 0
    %1013 = vmatmul.mubr.bf16.gmra.mrb[0].mxu0 %v958
    %v1014 = vpop.f32.mrb[0].mxu0
    %v1015 = vadd.f32 %v282, %v1014
    %v1016 = vpop.f32.mrb[0].mxu0
    %v1017 = vpop.f32.mrb[0].mxu0
    %v1018 = vadd.f32 %v282, %v1017
    %v1019 = vpop.f32.mrb[0].mxu0
    %1020 = vmatprep.mubr.bf16.mxu0 0
    %1021 = vmatmul.mubr.bf16.gmra.mrb[0].mxu0 %v959
    %v1022 = vpop.f32.mrb[0].mxu0
    %v1023 = vadd.f32 %v282, %v1022
    %v1024 = vpop.f32.mrb[0].mxu0
    %v1025 = vpop.f32.mrb[0].mxu0
    %v1026 = vadd.f32 %v282, %v1025
    %v1027 = vpop.f32.mrb[0].mxu0
    %1028 = vmatprep.mubr.bf16.mxu0 0
    %1029 = vmatmul.mubr.bf16.gmra.mrb[0].mxu0 %v960
    %v1030 = vpop.f32.mrb[0].mxu0
    %v1031 = vadd.f32 %v282, %v1030
    %v1032 = vpop.f32.mrb[0].mxu0
    %v1033 = vpop.f32.mrb[0].mxu0
    %v1034 = vadd.f32 %v282, %v1033
    %v1035 = vpop.f32.mrb[0].mxu0
    %1036 = vmatprep.mubr.bf16.mxu0 0
    %1037 = vmatmul.mubr.bf16.gmra.mrb[0].mxu0 %v961
    %v1038 = vpop.f32.mrb[0].mxu0
    %v1039 = vadd.f32 %v282, %v1038
    %v1040 = vpop.f32.mrb[0].mxu0
    %v1041 = vpop.f32.mrb[0].mxu0
    %v1042 = vadd.f32 %v282, %v1041
    %v1043 = vpop.f32.mrb[0].mxu0
    %1044 = vmatprep.mubr.bf16.mxu0 0
    %1045 = vmatmul.mubr.bf16.gmra.mrb[0].mxu0 %v962
    %v1046 = vpop.f32.mrb[0].mxu0
    %v1047 = vadd.f32 %v282, %v1046
    %v1048 = vpop.f32.mrb[0].mxu0
    %v1049 = vpop.f32.mrb[0].mxu0
    %v1050 = vadd.f32 %v282, %v1049
    %v1051 = vpop.f32.mrb[0].mxu0
    %1052 = vmatprep.mubr.bf16.mxu0 0
    %1053 = vmatmul.mubr.bf16.gmra.mrb[0].mxu0 %v963
    %v1054 = vpop.f32.mrb[0].mxu0
    %v1055 = vadd.f32 %v282, %v1054
    %v1056 = vpop.f32.mrb[0].mxu0
    %v1057 = vpop.f32.mrb[0].mxu0
    %v1058 = vadd.f32 %v282, %v1057
    %v1059 = vpop.f32.mrb[0].mxu0
    %1060 = vdwg.mxu0
    %v1061 = vmax.f32 %v999, 0.0
    %v1062 = vmax.f32 %v1002, 0.0
    %v1063 = vmax.f32 %v1007, 0.0
    %v1064 = vmax.f32 %v1010, 0.0
    %v1065 = vmax.f32 %v1015, 0.0
    %v1066 = vmax.f32 %v1018, 0.0
    %v1067 = vmax.f32 %v1023, 0.0
    %v1068 = vmax.f32 %v1026, 0.0
    %v1069 = vmax.f32 %v1031, 0.0
    %v1070 = vmax.f32 %v1034, 0.0
    %v1071 = vmax.f32 %v1039, 0.0
    %v1072 = vmax.f32 %v1042, 0.0
    %v1073 = vmax.f32 %v1047, 0.0
    %v1074 = vmax.f32 %v1050, 0.0
    %v1075 = vmax.f32 %v1055, 0.0
    %v1076 = vmax.f32 %v1058, 0.0
    %v1077 = vpack.c.bf16 %v1062, %v1061
    %v1078 = vpack.c.bf16 %v1064, %v1063
    %v1079 = vpack.c.bf16 %v1066, %v1065
    %v1080 = vpack.c.bf16 %v1068, %v1067
    %v1081 = vpack.c.bf16 %v1070, %v1069
    %v1082 = vpack.c.bf16 %v1072, %v1071
    %v1083 = vpack.c.bf16 %v1074, %v1073
    %v1084 = vpack.c.bf16 %v1076, %v1075
    %1085 = vmatprep.subr.bf16.mxu0 0
    %1086 = vmatpush1.bf16.msra.mxu0 %v491
    %1087 = vmatprep.subr.bf16.mxu0 0
    %1088 = vmatpush1.bf16.msra.mxu0 %v492
    %1089 = vmatprep.subr.bf16.mxu0 0
    %1090 = vmatpush1.bf16.msra.mxu0 %v493
    %1091 = vmatprep.subr.bf16.mxu0 0
    %1092 = vmatpush1.bf16.msra.mxu0 %v494
    %1093 = vmatprep.subr.bf16.mxu0 0
    %1094 = vmatpush1.bf16.msra.mxu0 %v495
    %1095 = vmatprep.subr.bf16.mxu0 0
    %1096 = vmatpush1.bf16.msra.mxu0 %v496
    %1097 = vmatprep.subr.bf16.mxu0 0
    %1098 = vmatpush1.bf16.msra.mxu0 %v497
    %1099 = vmatprep.subr.bf16.mxu0 0
    %1100 = vmatpush1.bf16.msra.mxu0 %v498
    %1101 = vmatprep.subr.bf16.mxu0 0
    %1102 = vmatpush1.bf16.msra.mxu0 0
    %1103 = vmatprep.subr.bf16.mxu0 0
    %1104 = vmatpush1.bf16.msra.mxu0 0
    %1105 = vmatprep.subr.bf16.mxu0 0
    %1106 = vmatpush1.bf16.msra.mxu0 0
    %1107 = vmatprep.subr.bf16.mxu0 0
    %1108 = vmatpush1.bf16.msra.mxu0 0
    %1109 = vmatprep.subr.bf16.mxu0 0
    %1110 = vmatpush1.bf16.msra.mxu0 0
    %1111 = vmatprep.subr.bf16.mxu0 0
    %1112 = vmatpush1.bf16.msra.mxu0 0
    %1113 = vmatprep.subr.bf16.mxu0 0
    %1114 = vmatpush1.bf16.msra.mxu0 0
    %1115 = vmatprep.subr.bf16.mxu0 0
    %1116 = vmatpush1.bf16.msra.mxu0 0
    %1117 = vmatprep.mubr.bf16.mxu0 0
    %1118 = vmatmul.mubr.bf16.gmra.mrb[0].mxu0 %v1077
    %v1119 = vpop.f32.mrb[0].mxu0
    %v1120 = vadd.f32 %v457, %v1119
    %v1121 = vpop.f32.mrb[0].mxu0
    %v1122 = vpop.f32.mrb[0].mxu0
    %v1123 = vadd.f32 %v457, %v1122
    %v1124 = vpop.f32.mrb[0].mxu0
    %1125 = vmatprep.mubr.bf16.mxu0 0
    %1126 = vmatmul.mubr.bf16.gmra.mrb[0].mxu0 %v1078
    %v1127 = vpop.f32.mrb[0].mxu0
    %v1128 = vadd.f32 %v457, %v1127
    %v1129 = vpop.f32.mrb[0].mxu0
    %v1130 = vpop.f32.mrb[0].mxu0
    %v1131 = vadd.f32 %v457, %v1130
    %v1132 = vpop.f32.mrb[0].mxu0
    %1133 = vmatprep.mubr.bf16.mxu0 0
    %1134 = vmatmul.mubr.bf16.gmra.mrb[0].mxu0 %v1079
    %v1135 = vpop.f32.mrb[0].mxu0
    %v1136 = vadd.f32 %v457, %v1135
    %v1137 = vpop.f32.mrb[0].mxu0
    %v1138 = vpop.f32.mrb[0].mxu0
    %v1139 = vadd.f32 %v457, %v1138
    %v1140 = vpop.f32.mrb[0].mxu0
    %1141 = vmatprep.mubr.bf16.mxu0 0
    %1142 = vmatmul.mubr.bf16.gmra.mrb[0].mxu0 %v1080
    %v1143 = vpop.f32.mrb[0].mxu0
    %v1144 = vadd.f32 %v457, %v1143
    %v1145 = vpop.f32.mrb[0].mxu0
    %v1146 = vpop.f32.mrb[0].mxu0
    %v1147 = vadd.f32 %v457, %v1146
    %v1148 = vpop.f32.mrb[0].mxu0
    %1149 = vmatprep.mubr.bf16.mxu0 0
    %1150 = vmatmul.mubr.bf16.gmra.mrb[0].mxu0 %v1081
    %v1151 = vpop.f32.mrb[0].mxu0
    %v1152 = vadd.f32 %v457, %v1151
    %v1153 = vpop.f32.mrb[0].mxu0
    %v1154 = vpop.f32.mrb[0].mxu0
    %v1155 = vadd.f32 %v457, %v1154
    %v1156 = vpop.f32.mrb[0].mxu0
    %1157 = vmatprep.mubr.bf16.mxu0 0
    %1158 = vmatmul.mubr.bf16.gmra.mrb[0].mxu0 %v1082
    %v1159 = vpop.f32.mrb[0].mxu0
    %v1160 = vadd.f32 %v457, %v1159
    %v1161 = vpop.f32.mrb[0].mxu0
    %v1162 = vpop.f32.mrb[0].mxu0
    %v1163 = vadd.f32 %v457, %v1162
    %v1164 = vpop.f32.mrb[0].mxu0
    %1165 = vmatprep.mubr.bf16.mxu0 0
    %1166 = vmatmul.mubr.bf16.gmra.mrb[0].mxu0 %v1083
    %v1167 = vpop.f32.mrb[0].mxu0
    %v1168 = vadd.f32 %v457, %v1167
    %v1169 = vpop.f32.mrb[0].mxu0
    %v1170 = vpop.f32.mrb[0].mxu0
    %v1171 = vadd.f32 %v457, %v1170
    %v1172 = vpop.f32.mrb[0].mxu0
    %1173 = vmatprep.mubr.bf16.mxu0 0
    %1174 = vmatmul.mubr.bf16.gmra.mrb[0].mxu0 %v1084
    %v1175 = vpop.f32.mrb[0].mxu0
    %v1176 = vadd.f32 %v457, %v1175
    %v1177 = vpop.f32.mrb[0].mxu0
    %v1178 = vpop.f32.mrb[0].mxu0
    %v1179 = vadd.f32 %v457, %v1178
    %v1180 = vpop.f32.mrb[0].mxu0
    %1181 = vdwg.mxu0
    %v1182 = vmax.f32 %v1120, 0.0
    %v1183 = vmax.f32 %v1123, 0.0
    %v1184 = vmax.f32 %v1128, 0.0
    %v1185 = vmax.f32 %v1131, 0.0
    %v1186 = vmax.f32 %v1136, 0.0
    %v1187 = vmax.f32 %v1139, 0.0
    %v1188 = vmax.f32 %v1144, 0.0
    %v1189 = vmax.f32 %v1147, 0.0
    %v1190 = vmax.f32 %v1152, 0.0
    %v1191 = vmax.f32 %v1155, 0.0
    %v1192 = vmax.f32 %v1160, 0.0
    %v1193 = vmax.f32 %v1163, 0.0
    %v1194 = vmax.f32 %v1168, 0.0
    %v1195 = vmax.f32 %v1171, 0.0
    %v1196 = vmax.f32 %v1176, 0.0
    %v1197 = vmax.f32 %v1179, 0.0
    %v1198 = vpack.c.bf16 %v1183, %v1182
    %v1199 = vpack.c.bf16 %v1185, %v1184
    %v1200 = vpack.c.bf16 %v1187, %v1186
    %v1201 = vpack.c.bf16 %v1189, %v1188
    %v1202 = vpack.c.bf16 %v1191, %v1190
    %v1203 = vpack.c.bf16 %v1193, %v1192
    %v1204 = vpack.c.bf16 %v1195, %v1194
    %v1205 = vpack.c.bf16 %v1197, %v1196
    %1206 = vmatprep.subr.bf16.mxu0 0
    %1207 = vmatpush1.bf16.msra.mxu0 %v666
    %1208 = vmatprep.subr.bf16.mxu0 0
    %1209 = vmatpush1.bf16.msra.mxu0 %v667
    %1210 = vmatprep.subr.bf16.mxu0 0
    %1211 = vmatpush1.bf16.msra.mxu0 %v668
    %1212 = vmatprep.subr.bf16.mxu0 0
    %1213 = vmatpush1.bf16.msra.mxu0 %v669
    %1214 = vmatprep.subr.bf16.mxu0 0
    %1215 = vmatpush1.bf16.msra.mxu0 %v670
    %1216 = vmatprep.subr.bf16.mxu0 0
    %1217 = vmatpush1.bf16.msra.mxu0 %v671
    %1218 = vmatprep.subr.bf16.mxu0 0
    %1219 = vmatpush1.bf16.msra.mxu0 %v672
    %1220 = vmatprep.subr.bf16.mxu0 0
    %1221 = vmatpush1.bf16.msra.mxu0 %v673
    %1222 = vmatprep.subr.bf16.mxu0 0
    %1223 = vmatpush1.bf16.msra.mxu0 0
    %1224 = vmatprep.subr.bf16.mxu0 0
    %1225 = vmatpush1.bf16.msra.mxu0 0
    %1226 = vmatprep.subr.bf16.mxu0 0
    %1227 = vmatpush1.bf16.msra.mxu0 0
    %1228 = vmatprep.subr.bf16.mxu0 0
    %1229 = vmatpush1.bf16.msra.mxu0 0
    %1230 = vmatprep.subr.bf16.mxu0 0
    %1231 = vmatpush1.bf16.msra.mxu0 0
    %1232 = vmatprep.subr.bf16.mxu0 0
    %1233 = vmatpush1.bf16.msra.mxu0 0
    %1234 = vmatprep.subr.bf16.mxu0 0
    %1235 = vmatpush1.bf16.msra.mxu0 0
    %1236 = vmatprep.subr.bf16.mxu0 0
    %1237 = vmatpush1.bf16.msra.mxu0 0
    %1238 = vmatprep.mubr.bf16.mxu0 0
    %1239 = vmatmul.mubr.bf16.gmra.mrb[0].mxu0 %v1198
    %v1240 = vpop.f32.mrb[0].mxu0
    %v1241 = vadd.f32 %v632, %v1240
    %v1242 = vpop.f32.mrb[0].mxu0
    %v1243 = vpop.f32.mrb[0].mxu0
    %v1244 = vadd.f32 %v632, %v1243
    %v1245 = vpop.f32.mrb[0].mxu0
    %1246 = vmatprep.mubr.bf16.mxu0 0
    %1247 = vmatmul.mubr.bf16.gmra.mrb[0].mxu0 %v1199
    %v1248 = vpop.f32.mrb[0].mxu0
    %v1249 = vadd.f32 %v632, %v1248
    %v1250 = vpop.f32.mrb[0].mxu0
    %v1251 = vpop.f32.mrb[0].mxu0
    %v1252 = vadd.f32 %v632, %v1251
    %v1253 = vpop.f32.mrb[0].mxu0
    %1254 = vmatprep.mubr.bf16.mxu0 0
    %1255 = vmatmul.mubr.bf16.gmra.mrb[0].mxu0 %v1200
    %v1256 = vpop.f32.mrb[0].mxu0
    %v1257 = vadd.f32 %v632, %v1256
    %v1258 = vpop.f32.mrb[0].mxu0
    %v1259 = vpop.f32.mrb[0].mxu0
    %v1260 = vadd.f32 %v632, %v1259
    %v1261 = vpop.f32.mrb[0].mxu0
    %1262 = vmatprep.mubr.bf16.mxu0 0
    %1263 = vmatmul.mubr.bf16.gmra.mrb[0].mxu0 %v1201
    %v1264 = vpop.f32.mrb[0].mxu0
    %v1265 = vadd.f32 %v632, %v1264
    %v1266 = vpop.f32.mrb[0].mxu0
    %v1267 = vpop.f32.mrb[0].mxu0
    %v1268 = vadd.f32 %v632, %v1267
    %v1269 = vpop.f32.mrb[0].mxu0
    %1270 = vmatprep.mubr.bf16.mxu0 0
    %1271 = vmatmul.mubr.bf16.gmra.mrb[0].mxu0 %v1202
    %v1272 = vpop.f32.mrb[0].mxu0
    %v1273 = vadd.f32 %v632, %v1272
    %v1274 = vpop.f32.mrb[0].mxu0
    %v1275 = vpop.f32.mrb[0].mxu0
    %v1276 = vadd.f32 %v632, %v1275
    %v1277 = vpop.f32.mrb[0].mxu0
    %1278 = vmatprep.mubr.bf16.mxu0 0
    %1279 = vmatmul.mubr.bf16.gmra.mrb[0].mxu0 %v1203
    %v1280 = vpop.f32.mrb[0].mxu0
    %v1281 = vadd.f32 %v632, %v1280
    %v1282 = vpop.f32.mrb[0].mxu0
    %v1283 = vpop.f32.mrb[0].mxu0
    %v1284 = vadd.f32 %v632, %v1283
    %v1285 = vpop.f32.mrb[0].mxu0
    %1286 = vmatprep.mubr.bf16.mxu0 0
    %1287 = vmatmul.mubr.bf16.gmra.mrb[0].mxu0 %v1204
    %v1288 = vpop.f32.mrb[0].mxu0
    %v1289 = vadd.f32 %v632, %v1288
    %v1290 = vpop.f32.mrb[0].mxu0
    %v1291 = vpop.f32.mrb[0].mxu0
    %v1292 = vadd.f32 %v632, %v1291
    %v1293 = vpop.f32.mrb[0].mxu0
    %1294 = vmatprep.mubr.bf16.mxu0 0
    %1295 = vmatmul.mubr.bf16.gmra.mrb[0].mxu0 %v1205
    %v1296 = vpop.f32.mrb[0].mxu0
    %v1297 = vadd.f32 %v632, %v1296
    %v1298 = vpop.f32.mrb[0].mxu0
    %v1299 = vpop.f32.mrb[0].mxu0
    %v1300 = vadd.f32 %v632, %v1299
    %v1301 = vpop.f32.mrb[0].mxu0
    %1302 = vdwg.mxu0
    %1303 = vst [vmem:[#allocation2 + $0x80] sm:$0xff] %v1241
    %1304 = vst [vmem:[#allocation2 + $0x88] sm:$0xff] %v1244
    %1305 = vst [vmem:[#allocation2 + $0x90] sm:$0xff] %v1249
    %1306 = vst [vmem:[#allocation2 + $0x98] sm:$0xff] %v1252
    %1307 = vst [vmem:[#allocation2 + $0xa0] sm:$0xff] %v1257
    %1308 = vst [vmem:[#allocation2 + $0xa8] sm:$0xff] %v1260
    %1309 = vst [vmem:[#allocation2 + $0xb0] sm:$0xff] %v1265
    %1310 = vst [vmem:[#allocation2 + $0xb8] sm:$0xff] %v1268
    %1311 = vst [vmem:[#allocation2 + $0xc0] sm:$0xff] %v1273
    %1312 = vst [vmem:[#allocation2 + $0xc8] sm:$0xff] %v1276
    %1313 = vst [vmem:[#allocation2 + $0xd0] sm:$0xff] %v1281
    %1314 = vst [vmem:[#allocation2 + $0xd8] sm:$0xff] %v1284
    %1315 = vst [vmem:[#allocation2 + $0xe0] sm:$0xff] %v1289
    %1316 = vst [vmem:[#allocation2 + $0xe8] sm:$0xff] %v1292
    %1317 = vst [vmem:[#allocation2 + $0xf0] sm:$0xff] %v1297
    %1318 = vst [vmem:[#allocation2 + $0xf8] sm:$0xff] %v1300
    // Predicated region
    $region38: #{output_net_forward.1} parent=1 // pred_check
      _
    $region39: #{output_net_forward.1} parent=1 // pred_check_branch
      %1320 = sbr.rel (0) target = $region41
    $region40: #{output_net_forward.1} parent=1 // pred_region
      %s1322 = ssub.s32 4096, 4096
      %1323 = vsyncadd [#allocation3], %s1322
      %s1324 = sshll.u32 [#allocation2], 4
      %s1325 = int_to_ptr.vmem [resolvable:$true] %s1324
      %1330 = dma.vmem_to_hbm [thread:$0]  %s1325, 4096, %s9, [#allocation3], 128, 128, 8
    $region41: #{output_net_forward.1} parent=1 // pred_fallthru
      _
    // Predicated region
    $region42: #{output_net_forward.1} parent=1 // pred_check
      _
    $region43: #{output_net_forward.1} parent=1 // pred_check_branch
      %1332 = sbr.rel (0) target = $region45
    $region44: #{output_net_forward.1} parent=1 // pred_region
      %1333 = dma.done [#allocation3], 4096
    $region45: #{output_net_forward.1} parent=1 // pred_fallthru
      _
    %1334 = vsyncpa [#allocation3], 1

</llo_original>
